<compile_context>
chip_gen: v7x
topology: tpu7x:2x2x1
jax: 0.10.0
libtpu: 0.0.40
codegen_flags: <defaults>
</compile_context>

<pallas_src>
import jax
import jax.numpy as jnp
from jax.experimental import pallas as pl
from jax.experimental.pallas import tpu as pltpu


def _ceil_div(a, b):
    return -(-a // b)


def _round_up(a, m):
    return _ceil_div(a, m) * m


def _gelu_like_kernel(x_ref, w_ref, b_ref, o_ref):
    # x_ref: (TM8, 1024) packed rows   w_ref: (1024, 128) block-diag W^T
    # b_ref: (1, 128) tiled bias       o_ref: (TM8, 128) packed output
    x = x_ref[...].astype(jnp.float32)
    w = w_ref[...].astype(jnp.float32)
    b = b_ref[...].astype(jnp.float32)

    # v1 (packed layout): each 16-lane group of a row is one original row's
    # Linear(128->16) output.
    v1 = jnp.dot(x, w, preferred_element_type=jnp.float32) + b

    # Elementwise tail, algebraically identical to the module:
    #   v2 = 0.5*v1
    #   v4 = 0.7978845608028654*(v1 + 0.044715*v1^3)
    #      = v1*(0.7978845608028654 + 0.035677408136300125*v1^2)
    #   out = v2*(sigmoid(v4) + 1) = 0.5*v1 + 0.5*v1*sigmoid(v4)
    half = v1 * 0.5
    v4 = v1 * (0.7978845608028654 + 0.035677408136300125 * (v1 * v1))
    o_ref[...] = (half + half * jax.nn.sigmoid(v4)).astype(o_ref.dtype)


def _fused_small_batch(x, weight, bias):
    # Tiny-B fast path: let XLA fuse it; a pallas_call would be pure overhead.
    v1 = x @ weight.T + bias
    v2 = v1 * 0.5
    v3 = v1 + v1 * v1 * v1 * 0.044715
    v4 = v3 * 0.7978845608028654
    return v2 * (jax.nn.sigmoid(v4) + 1.0)


def model_forward(x, weight, bias, *, tm8=1024, small_batch=256):
    """x: (B, 128); weight: (16, 128) [out_features, in_features]; bias: (16,)."""
    B, K = x.shape
    N, K2 = weight.shape
    assert K == K2 == 128 and N == 16, "kernel specialised to Linear(128 -> 16)"

    if B < small_batch:
        return _fused_small_batch(x, weight, bias)

    PACK = 128 // N  # = 8 rows packed per 128-lane output row

    # Pad batch to a multiple of PACK, pack 8 rows/row of x (free reshape of a
    # contiguous row-major buffer).
    B_pad = _round_up(B, PACK)
    x_pad = x if B_pad == B else jnp.pad(x, ((0, B_pad - B), (0, 0)))
    xp = x_pad.reshape(B_pad // PACK, PACK * K)          # (R, 1024)
    R = B_pad // PACK

    # Block-diagonal weight: W_big[128*s + k, 16*s + j] = W[j, k]
    w_big = jnp.kron(jnp.eye(PACK, dtype=weight.dtype), weight.T)   # (1024, 128)
    b_big = jnp.tile(bias, PACK).reshape(1, PACK * N)               # (1, 128)

    # Tile choice (in packed rows): big tiles to amortize per-step overhead,
    # but keep >= ~4 grid steps so DMA/compute overlap and (v7x) both
    # TensorCores get work.  Always a multiple of 8 for the (8,128) rule.
    min_steps = 4
    tm8_eff = min(tm8, max(8, _round_up(_ceil_div(R, min_steps), 8)))
    tm8_eff = min(tm8_eff, _round_up(R, 8))
    grid = (_ceil_div(R, tm8_eff),)

    itemsize = jnp.dtype(x.dtype).itemsize
    cost = pl.CostEstimate(
        flops=2 * R * (PACK * K) * 128 + 8 * R * 128,
        transcendentals=R * 128,
        bytes_accessed=R * PACK * K * itemsize
        + (PACK * K) * 128 * itemsize
        + R * 128 * itemsize,
    )

    out_packed = pl.pallas_call(
        _gelu_like_kernel,
        out_shape=jax.ShapeDtypeStruct((R, 128), x.dtype),
        grid=grid,
        in_specs=[
            # packed x: one batch tile per grid step (lane-dense, 4 MB class)
            pl.BlockSpec((tm8_eff, PACK * K), lambda i: (i, 0)),
            # weight / bias: same block every step -> resident in VMEM
            pl.BlockSpec((PACK * K, 128), lambda i: (0, 0)),
            pl.BlockSpec((1, 128), lambda i: (0, 0)),
        ],
        out_specs=pl.BlockSpec((tm8_eff, 128), lambda i: (i, 0)),
        compiler_params=pltpu.CompilerParams(
            dimension_semantics=("parallel",),   # megacore shard over batch (v7x)
            vmem_limit_bytes=32 * 1024 * 1024,
        ),
        cost_estimate=cost,
    )(xp, w_big, b_big)

    # Free metadata reshape back to (B_pad, 16); drop padded rows.
    return out_packed.reshape(B_pad, N)[:B]


def _reference(x, weight, bias):
    v1 = x @ weight.T + bias
    v2 = v1 * 0.5
    v3 = v1 + v1 * v1 * v1 * 0.044715
    v4 = v3 * 0.7978845608028654
    v5 = jax.nn.sigmoid(v4) + 1.0
    return v2 * v5


if __name__ == "__main__":
    key = jax.random.PRNGKey(0)
    kx1, kx2, kw, kb = jax.random.split(key, 4)

    # Module shapes: Linear(128 -> 16), spec input x1 = (1, 128)
    weight = jax.random.uniform(kw, (16, 128), dtype=jnp.float32,
                                minval=-0.088, maxval=0.088)
    bias = jax.random.uniform(kb, (16,), dtype=jnp.float32,
                              minval=-0.088, maxval=0.088)

    # Case 1: the spec's shape (tiny-B fast path).
    x1 = jax.random.normal(kx1, (1, 128), dtype=jnp.float32)
    out1 = jax.block_until_ready(model_forward(x1, weight, bias))
    ref1 = _reference(x1, weight, bias)
    assert out1.shape == (1, 16)
    assert jnp.allclose(out1, ref1, atol=1e-5, rtol=1e-5)

    # Case 2: larger batch to exercise the packed, tiled Pallas path
    # (B not a multiple of 8 -> padding; not a multiple of the tile ->
    # partial last block).
    x2 = jax.random.normal(kx2, (4100, 128), dtype=jnp.float32)
    out2 = jax.block_until_ready(model_forward(x2, weight, bias))
    ref2 = _reference(x2, weight, bias)
    assert out2.shape == (4100, 16)
    assert jnp.allclose(out2, ref2, atol=1e-5, rtol=1e-5)

    print("KERNEL_OK")
</pallas_src>

<mosaic_0001>
module attributes {stable_mosaic.version = 11 : i64} {
  func.func @_gelu_like_kernel(%arg0: i32, %arg1: memref<136x1024xf32, #tpu.memory_space<vmem>>, %arg2: memref<1024x128xf32, #tpu.memory_space<vmem>>, %arg3: memref<1x128xf32, #tpu.memory_space<vmem>>, %arg4: memref<136x128xf32, #tpu.memory_space<vmem>>) attributes {dimension_semantics = [#tpu.dimension_semantics<parallel>], iteration_bounds = array<i64: 4>, scalar_prefetch = 0 : i64, scratch_operands = 0 : i64, tpu.core_type = #tpu.core_type<tc>, window_params = [{transform_indices = @transform_0, window_bounds = array<i64: 136, 1024>}, {pipeline_mode = #tpu.pipeline_mode<synchronous>, transform_indices = @transform_1, window_bounds = array<i64: 1024, 128>}, {pipeline_mode = #tpu.pipeline_mode<synchronous>, transform_indices = @transform_2, window_bounds = array<i64: 1, 128>}, {transform_indices = @transform_3, window_bounds = array<i64: 136, 128>}]} {
    %c0 = arith.constant 0 : index
    %c0_0 = arith.constant 0 : index
    %0 = vector.load %arg1[%c0, %c0_0] : memref<136x1024xf32, #tpu.memory_space<vmem>>, vector<136x1024xf32>
    %c0_1 = arith.constant 0 : index
    %c0_2 = arith.constant 0 : index
    %1 = vector.load %arg2[%c0_1, %c0_2] : memref<1024x128xf32, #tpu.memory_space<vmem>>, vector<1024x128xf32>
    %c0_3 = arith.constant 0 : index
    %c0_4 = arith.constant 0 : index
    %2 = vector.load %arg3[%c0_3, %c0_4] : memref<1x128xf32, #tpu.memory_space<vmem>>, vector<1x128xf32>
    %cst = arith.constant dense<0.000000e+00> : vector<136x128xf32>
    %3 = tpu.matmul %0, %1, %cst {dimension_numbers = #tpu.dot_dimension_numbers<[1], [0], [0], [1], [0, 0, 1, 1], [], []>} : vector<136x1024xf32>, vector<1024x128xf32>, vector<136x128xf32> -> vector<136x128xf32>
    %4 = vector.broadcast %2 : vector<1x128xf32> to vector<136x128xf32>
    %5 = arith.addf %3, %4 : vector<136x128xf32>
    %cst_5 = arith.constant 5.000000e-01 : f32
    %6 = vector.broadcast %cst_5 : f32 to vector<136x128xf32>
    %7 = arith.mulf %5, %6 : vector<136x128xf32>
    %8 = arith.mulf %5, %5 : vector<136x128xf32>
    %cst_6 = arith.constant 0.0356774069 : f32
    %9 = vector.broadcast %cst_6 : f32 to vector<136x128xf32>
    %10 = arith.mulf %9, %8 : vector<136x128xf32>
    %cst_7 = arith.constant 0.797884583 : f32
    %11 = vector.broadcast %cst_7 : f32 to vector<136x128xf32>
    %12 = arith.addf %11, %10 : vector<136x128xf32>
    %13 = arith.mulf %5, %12 : vector<136x128xf32>
    %14 = arith.negf %13 : vector<136x128xf32>
    %15 = math.exp %14 : vector<136x128xf32>
    %cst_8 = arith.constant 1.000000e+00 : f32
    %16 = vector.broadcast %cst_8 : f32 to vector<136x128xf32>
    %17 = arith.addf %16, %15 : vector<136x128xf32>
    %18 = arith.divf %16, %17 : vector<136x128xf32>
    %19 = arith.mulf %7, %18 : vector<136x128xf32>
    %20 = arith.addf %7, %19 : vector<136x128xf32>
    %c0_9 = arith.constant 0 : index
    %c0_10 = arith.constant 0 : index
    %21 = vector.load %arg4[%c0_9, %c0_10] : memref<136x128xf32, #tpu.memory_space<vmem>>, vector<136x128xf32>
    tpu.vector_store %arg4[%c0_9, %c0_10], %20 {strides = array<i32>} : memref<136x128xf32, #tpu.memory_space<vmem>>, vector<136x128xf32>,
    return
  }
  func.func @transform_0(%arg0: i32) -> (i32, i32) {
    %c0_i32 = arith.constant 0 : i32
    %c0_i32_0 = arith.constant 0 : i32
    return %arg0, %c0_i32 : i32, i32
  }
  func.func @transform_1(%arg0: i32) -> (i32, i32) {
    %c0_i32 = arith.constant 0 : i32
    %c0_i32_0 = arith.constant 0 : i32
    %c0_i32_1 = arith.constant 0 : i32
    return %c0_i32, %c0_i32_0 : i32, i32
  }
  func.func @transform_2(%arg0: i32) -> (i32, i32) {
    %c0_i32 = arith.constant 0 : i32
    %c0_i32_0 = arith.constant 0 : i32
    %c0_i32_1 = arith.constant 0 : i32
    return %c0_i32, %c0_i32_0 : i32, i32
  }
  func.func @transform_3(%arg0: i32) -> (i32, i32) {
    %c0_i32 = arith.constant 0 : i32
    %c0_i32_0 = arith.constant 0 : i32
    return %arg0, %c0_i32 : i32, i32
  }
}

</mosaic_0001>

<llo_original>
// kernel: tpu_custom_call.1
$region0: #{tpu_custom_call.1}
  #allocation0 [shape = 'u32[]', space=smem, size = 0x4, offset = 0x4, fixed_abs, tag = 'smem constant byte address 0x4 - core index']
  #allocation1 [shape = 'u32[144,128]{1,0:T(1,128)}', space=vmem, size = 0x12000, scoped, tag = 'internal scratch']
  %s0 = inlined_call_operand.hbm [shape: f32[513,1024], index: 0, kind: input, shape index: {}]
  %s1 = inlined_call_operand.hbm [shape: f32[1024,128], index: 1, kind: input, shape index: {}]
  %s2 = inlined_call_operand.hbm [shape: f32[1,128], index: 2, kind: input, shape index: {}]
  %s3 = inlined_call_operand.hbm [shape: f32[513,128], index: 3, kind: output, shape index: {}]
  %s4 = sld [smem:[#allocation0]]
  $region57: #{tpu_custom_call.1} parent=0
    _
  %s6 = ssub.s32 1, %s4
  %s7 = scalar_select 0, %s6, %s4
  $region1: #{tpu_custom_call.1} parent=0
    #allocation2 [shape = 'u8[1114112]{0}', space=vmem, size = 0x110000, scoped, tag = 'input window, operand 0']
    #allocation3 [shape = 's32[2]{0}', space=sflag, size = 0x8, scoped, tag = 'scoped memory for tpu_custom_call.1']
    #allocation4 [shape = 's32[2]{0}', space=sflag, size = 0x8, scoped, tag = 'scoped memory for tpu_custom_call.1']
    #allocation5 [shape = 'u8[524288]{0}', space=vmem, size = 0x80000, scoped, tag = 'input window, operand 1, single buffered']
    #allocation6 [shape = 's32[1]{0}', space=sflag, size = 0x4, scoped, tag = 'scoped memory for tpu_custom_call.1']
    #allocation7 [shape = 'u8[512]{0}', space=vmem, size = 0x400, scoped, tag = 'input window, operand 2, single buffered']
    #allocation8 [shape = 'u8[139264]{0}', space=vmem, size = 0x22000, scoped, tag = 'output window, operand 0']
    %8 = vsyncpa [#allocation3], 0
    %s9 = scalar_lea.sflag [#allocation3], 1
    %10 = vsyncpa %s9, 0
    %11 = vsyncpa [#allocation6], 0
    %12 = vsyncpa [#allocation4], 0
    %s13 = scalar_lea.sflag [#allocation4], 1
    %14 = vsyncpa %s13, 0
    loop: start=0, step=1, limit=6
    $region2: #{tpu_custom_call.1} parent=1 // loop_pre_header
      _
    $region3: #{tpu_custom_call.1} parent=1 // loop_header
      %s16 = sphi 0, %s20
      %p17 = scmp.ge.s32.totalorder %s16, 6
      %s26 = sphi 0, %s28
      %s29 = sphi 0, %s26
      %s30 = sphi 0, %s29
      %s46 = sphi 0, %s30
      %s50 = sphi 0, %s50
      %s52 = sphi 0, %s50
      %s53 = sphi 0, %s52
      %s67 = sphi 0, %s53
      %s71 = sphi 0, %s71
      %s73 = sphi 0, %s71
      %s74 = sphi 0, %s73
      %s88 = sphi 0, %s74
      %s94 = sphi 0, %s96
      %s97 = sphi 0, %s94
      %s98 = sphi 0, %s97
      %s114 = sphi 0, %s98
    $region4: #{tpu_custom_call.1} parent=1 // loop_header_branch
      %19 = sbr.rel (%p17) target = $region8
    $region5: #{tpu_custom_call.1} parent=1 // loop_body
      %s21 = ssub.s32 %s16, 1
      %s22 = ssub.s32 %s16, 2
      %s23 = sadd.s32 %s16, 1
      %s24 = ssub.s32 %s16, %s23
      %p25 = scmp.eq.s32.totalorder %s24, 0
      %s27 = sadd.s32 %s26, 1
      %s28 = scalar_select %p25, %s26, %s27
      %p31 = pneg %p25
      %p32 = scmp.eq.s32.totalorder %s16, 3
      %p33 = por %p31, %p32
      %p34 = scmp.ne.s32.totalorder %s26, %s29
      %p35 = scmp.eq.s32.totalorder %s16, 0
      %p36 = por %p34, %p35
      %p37 = scmp.ne.s32.totalorder %s26, %s29
      %p38 = scmp.eq.s32.totalorder %s21, 3
      %p39 = por %p37, %p38
      %p40 = scmp.ne.s32.totalorder %s29, %s30
      %p41 = scmp.eq.s32.totalorder %s21, 0
      %p42 = por %p40, %p41
      %p43 = scmp.ne.s32.totalorder %s29, %s30
      %p44 = scmp.eq.s32.totalorder %s22, 3
      %p45 = por %p43, %p44
      %p47 = scmp.ne.s32.totalorder %s30, %s46
      %p48 = scmp.eq.s32.totalorder %s22, 0
      %p49 = por %p47, %p48
      %s51 = sadd.s32 %s50, 1
      %p54 = scmp.eq.s32.totalorder %s16, 3
      %p55 = scmp.ne.s32.totalorder %s50, %s52
      %p56 = scmp.eq.s32.totalorder %s16, 0
      %p57 = por %p55, %p56
      %p58 = scmp.ne.s32.totalorder %s50, %s52
      %p59 = scmp.eq.s32.totalorder %s21, 3
      %p60 = por %p58, %p59
      %p61 = scmp.ne.s32.totalorder %s52, %s53
      %p62 = scmp.eq.s32.totalorder %s21, 0
      %p63 = por %p61, %p62
      %p64 = scmp.ne.s32.totalorder %s52, %s53
      %p65 = scmp.eq.s32.totalorder %s22, 3
      %p66 = por %p64, %p65
      %p68 = scmp.ne.s32.totalorder %s53, %s67
      %p69 = scmp.eq.s32.totalorder %s22, 0
      %p70 = por %p68, %p69
      %s72 = sadd.s32 %s71, 1
      %p75 = scmp.eq.s32.totalorder %s16, 3
      %p76 = scmp.ne.s32.totalorder %s71, %s73
      %p77 = scmp.eq.s32.totalorder %s16, 0
      %p78 = por %p76, %p77
      %p79 = scmp.ne.s32.totalorder %s71, %s73
      %p80 = scmp.eq.s32.totalorder %s21, 3
      %p81 = por %p79, %p80
      %p82 = scmp.ne.s32.totalorder %s73, %s74
      %p83 = scmp.eq.s32.totalorder %s21, 0
      %p84 = por %p82, %p83
      %p85 = scmp.ne.s32.totalorder %s73, %s74
      %p86 = scmp.eq.s32.totalorder %s22, 3
      %p87 = por %p85, %p86
      %p89 = scmp.ne.s32.totalorder %s74, %s88
      %p90 = scmp.eq.s32.totalorder %s22, 0
      %p91 = por %p89, %p90
      %s92 = ssub.s32 %s16, %s23
      %p93 = scmp.eq.s32.totalorder %s92, 0
      %s95 = sadd.s32 %s94, 1
      %s96 = scalar_select %p93, %s94, %s95
      %p99 = pneg %p93
      %p100 = scmp.eq.s32.totalorder %s16, 3
      %p101 = por %p99, %p100
      %p102 = scmp.ne.s32.totalorder %s94, %s97
      %p103 = scmp.eq.s32.totalorder %s16, 0
      %p104 = por %p102, %p103
      %p105 = scmp.ne.s32.totalorder %s94, %s97
      %p106 = scmp.eq.s32.totalorder %s21, 3
      %p107 = por %p105, %p106
      %p108 = scmp.ne.s32.totalorder %s97, %s98
      %p109 = scmp.eq.s32.totalorder %s21, 0
      %p110 = por %p108, %p109
      %p111 = scmp.ne.s32.totalorder %s97, %s98
      %p112 = scmp.eq.s32.totalorder %s22, 3
      %p113 = por %p111, %p112
      %p115 = scmp.ne.s32.totalorder %s98, %s114
      %p116 = scmp.eq.s32.totalorder %s22, 0
      %p117 = por %p115, %p116
      %p118 = scmp.le.s32.totalorder 1, %s16
      %p119 = scmp.lt.s32.totalorder %s16, 5
      %p120 = pnand %p118, %p119
      %p121 = pneg %p120
      // Predicated region
      $region9: #{tpu_custom_call.1} parent=5 // pred_check
        _
      $region10: #{tpu_custom_call.1} parent=5 // pred_check_branch
        %123 = sbr.rel (%p120) target = $region12
      $region11: #{tpu_custom_call.1} parent=5 // pred_region
        %s124 = ssub.s32 %s16, 1
        // Predicated region
        $region13: #{tpu_custom_call.1} parent=11 // pred_check
          %p125 = pneg %p63
        $region14: #{tpu_custom_call.1} parent=11 // pred_check_branch
          %127 = sbr.rel (%p125) target = $region16
        $region15: #{tpu_custom_call.1} parent=11 // pred_region
          %s129 = ssub.s32 16384, 16384
          %130 = vsyncadd [#allocation6], %s129
          %s131 = sshll.u32 [#allocation5], 4
          %s132 = int_to_ptr.vmem [resolvable:$true] %s131
          %137 = dma.hbm_to_vmem [thread:$0]  %s1, 16384, %s132, [#allocation6], 128, 128, 8
        $region16: #{tpu_custom_call.1} parent=11 // pred_fallthru
          _
        // Predicated region
        $region17: #{tpu_custom_call.1} parent=11 // pred_check
          %p138 = pneg %p84
        $region18: #{tpu_custom_call.1} parent=11 // pred_check_branch
          %140 = sbr.rel (%p138) target = $region20
        $region19: #{tpu_custom_call.1} parent=11 // pred_region
          %s142 = ssub.s32 16, 16
          %143 = vsyncadd [#allocation6], %s142
          %s145 = sshll.u32 [#allocation7], 4
          %s146 = int_to_ptr.vmem [resolvable:$true] %s145
          %148 = dma.hbm_to_vmem [thread:$0]  %s2, 16, %s146, [#allocation6]
        $region20: #{tpu_custom_call.1} parent=11 // pred_fallthru
          _
      $region12: #{tpu_custom_call.1} parent=5 // pred_fallthru
        _
      %p149 = scmp.lt.s32.totalorder %s16, 4
      // Predicated region
      $region21: #{tpu_custom_call.1} parent=5 // pred_check
        %p150 = pneg %p149
      $region22: #{tpu_custom_call.1} parent=5 // pred_check_branch
        %152 = sbr.rel (%p150) target = $region24
      $region23: #{tpu_custom_call.1} parent=5 // pred_region
        // Predicated region
        $region25: #{tpu_custom_call.1} parent=23 // pred_check
          %p153 = pneg %p36
        $region26: #{tpu_custom_call.1} parent=23 // pred_check_branch
          %155 = sbr.rel (%p153) target = $region28
        $region27: #{tpu_custom_call.1} parent=23 // pred_region
          %s156 = sand.u32 %s26, 1
          %s157 = scalar_lea.sflag [#allocation3], %s156
          %s158 = sand.u32 %s26, 1
          %s159 = smul.addr %s158, 1088
          %s160 = scalar_lea.vmem [#allocation2], %s159
          %s161 = smul.u32 17, %s16
          %s162 = ssub.s32 65, %s161
          %p163 = scmp.lt.s32.totalorder %s162, 17
          %s164 = scalar_select %p163, %s162, 17
          %s165 = smul.u32 128, %s164
          %s166 = smul.u32 %s165, 8
          %s168 = ssub.s32 17408, %s166
          %169 = vsyncadd %s157, %s168
          %p170 = scmp.ne.s32.totalorder 0, %s166
          %s171 = smul.addr %s161, 8
          %s172 = smul.addr %s171, 128
          %s173 = scalar_lea.hbm %s0, %s172
          %s174 = smul.u32 64, %s164
          %s175 = sshll.u32 %s160, 4
          %s176 = int_to_ptr.vmem [resolvable:$true] %s175
          %s177 = sshll.u32 %s174, 4
          %181 = dma.hbm_to_vmem [thread:$0]  (%p170), %s173, %s177, %s176, %s157, 1024, 1024, 64
        $region28: #{tpu_custom_call.1} parent=23 // pred_fallthru
          _
      $region24: #{tpu_custom_call.1} parent=5 // pred_fallthru
        _
      %p182 = scmp.le.s32.totalorder 1, %s16
      %p183 = scmp.lt.s32.totalorder %s16, 5
      %p184 = pnand %p182, %p183
      %p185 = pneg %p184
      // Predicated region
      $region29: #{tpu_custom_call.1} parent=5 // pred_check
        _
      $region30: #{tpu_custom_call.1} parent=5 // pred_check_branch
        %187 = sbr.rel (%p184) target = $region32
      $region31: #{tpu_custom_call.1} parent=5 // pred_region
        %s188 = ssub.s32 %s16, 1
        %s189 = sand.u32 %s29, 1
        %s190 = scalar_lea.sflag [#allocation3], %s189
        %s191 = sand.u32 %s29, 1
        %s192 = smul.addr %s191, 1088
        %s193 = scalar_lea.vmem [#allocation2], %s192
        // Predicated region
        $region33: #{tpu_custom_call.1} parent=31 // pred_check
          %p194 = pneg %p42
        $region34: #{tpu_custom_call.1} parent=31 // pred_check_branch
          %196 = sbr.rel (%p194) target = $region36
        $region35: #{tpu_custom_call.1} parent=31 // pred_region
          %197 = dma.done %s190, 17408
        $region36: #{tpu_custom_call.1} parent=31 // pred_fallthru
          _
        // Predicated region
        $region37: #{tpu_custom_call.1} parent=31 // pred_check
          %p198 = pneg %p63
        $region38: #{tpu_custom_call.1} parent=31 // pred_check_branch
          %200 = sbr.rel (%p198) target = $region40
        $region39: #{tpu_custom_call.1} parent=31 // pred_region
          %201 = dma.done [#allocation6], 16384
        $region40: #{tpu_custom_call.1} parent=31 // pred_fallthru
          _
        // Predicated region
        $region41: #{tpu_custom_call.1} parent=31 // pred_check
          %p202 = pneg %p84
        $region42: #{tpu_custom_call.1} parent=31 // pred_check_branch
          %204 = sbr.rel (%p202) target = $region44
        $region43: #{tpu_custom_call.1} parent=31 // pred_region
          %205 = dma.done [#allocation6], 16
        $region44: #{tpu_custom_call.1} parent=31 // pred_fallthru
          _
        %s206 = sand.u32 %s29, 1
        %s207 = scalar_lea.sflag [#allocation3], %s206
        %s208 = sand.u32 %s29, 1
        %s209 = smul.addr %s208, 1088
        %s210 = scalar_lea.vmem [#allocation2], %s209
        %p211 = pneg %p42
        %p212 = pneg %p39
        %p213 = pneg %p63
        %p214 = pneg %p60
        %p215 = pneg %p84
        %p216 = pneg %p81
        %p217 = pneg %p110
        %p218 = pneg %p107
        %s219 = sand.u32 %s97, 1
        %s220 = scalar_lea.sflag [#allocation4], %s219
        %s221 = sand.u32 %s97, 1
        %s222 = smul.addr %s221, 136
        %s223 = scalar_lea.vmem [#allocation8], %s222
        %s224 = smul.u32 17, %s21
        %s225 = ssub.s32 65, %s224
        %p226 = scmp.lt.s32.totalorder %s225, 17
        %s227 = scalar_select %p226, %s225, 17
        %s228 = smul.u32 128, %s227
        %s229 = smul.u32 %s228, 8
        %s230 = smul.u32 17, %s21
        %s231 = ssub.s32 65, %s230
        %p232 = scmp.lt.s32.totalorder %s231, 17
        %s233 = scalar_select %p232, %s231, 17
        %s234 = smul.u32 128, %s233
        %v235 = vld [vmem:[%s193] sm:$0xff]
        %v236 = vld [vmem:[%s193 + $0x8] sm:$0xff]
        %v237 = vld [vmem:[%s193 + $0x10] sm:$0xff]
        %v238 = vld [vmem:[%s193 + $0x18] sm:$0xff]
        %v239 = vld [vmem:[%s193 + $0x20] sm:$0xff]
        %v240 = vld [vmem:[%s193 + $0x28] sm:$0xff]
        %v241 = vld [vmem:[%s193 + $0x30] sm:$0xff]
        %v242 = vld [vmem:[%s193 + $0x38] sm:$0xff]
        %v243 = vld [vmem:[%s193 + $0x40] sm:$0xff]
        %v244 = vld [vmem:[%s193 + $0x48] sm:$0xff]
        %v245 = vld [vmem:[%s193 + $0x50] sm:$0xff]
        %v246 = vld [vmem:[%s193 + $0x58] sm:$0xff]
        %v247 = vld [vmem:[%s193 + $0x60] sm:$0xff]
        %v248 = vld [vmem:[%s193 + $0x68] sm:$0xff]
        %v249 = vld [vmem:[%s193 + $0x70] sm:$0xff]
        %v250 = vld [vmem:[%s193 + $0x78] sm:$0xff]
        %v251 = vld [vmem:[%s193 + $0x80] sm:$0xff]
        %v252 = vld [vmem:[%s193 + $0x88] sm:$0xff]
        %v253 = vld [vmem:[%s193 + $0x90] sm:$0xff]
        %v254 = vld [vmem:[%s193 + $0x98] sm:$0xff]
        %v255 = vld [vmem:[%s193 + $0xa0] sm:$0xff]
        %v256 = vld [vmem:[%s193 + $0xa8] sm:$0xff]
        %v257 = vld [vmem:[%s193 + $0xb0] sm:$0xff]
        %v258 = vld [vmem:[%s193 + $0xb8] sm:$0xff]
        %v259 = vld [vmem:[%s193 + $0xc0] sm:$0xff]
        %v260 = vld [vmem:[%s193 + $0xc8] sm:$0xff]
        %v261 = vld [vmem:[%s193 + $0xd0] sm:$0xff]
        %v262 = vld [vmem:[%s193 + $0xd8] sm:$0xff]
        %v263 = vld [vmem:[%s193 + $0xe0] sm:$0xff]
        %v264 = vld [vmem:[%s193 + $0xe8] sm:$0xff]
        %v265 = vld [vmem:[%s193 + $0xf0] sm:$0xff]
        %v266 = vld [vmem:[%s193 + $0xf8] sm:$0xff]
        %v267 = vld [vmem:[%s193 + $0x100] sm:$0xff]
        %v268 = vld [vmem:[%s193 + $0x108] sm:$0xff]
        %v269 = vld [vmem:[%s193 + $0x110] sm:$0xff]
        %v270 = vld [vmem:[%s193 + $0x118] sm:$0xff]
        %v271 = vld [vmem:[%s193 + $0x120] sm:$0xff]
        %v272 = vld [vmem:[%s193 + $0x128] sm:$0xff]
        %v273 = vld [vmem:[%s193 + $0x130] sm:$0xff]
        %v274 = vld [vmem:[%s193 + $0x138] sm:$0xff]
        %v275 = vld [vmem:[%s193 + $0x140] sm:$0xff]
        %v276 = vld [vmem:[%s193 + $0x148] sm:$0xff]
        %v277 = vld [vmem:[%s193 + $0x150] sm:$0xff]
        %v278 = vld [vmem:[%s193 + $0x158] sm:$0xff]
        %v279 = vld [vmem:[%s193 + $0x160] sm:$0xff]
        %v280 = vld [vmem:[%s193 + $0x168] sm:$0xff]
        %v281 = vld [vmem:[%s193 + $0x170] sm:$0xff]
        %v282 = vld [vmem:[%s193 + $0x178] sm:$0xff]
        %v283 = vld [vmem:[%s193 + $0x180] sm:$0xff]
        %v284 = vld [vmem:[%s193 + $0x188] sm:$0xff]
        %v285 = vld [vmem:[%s193 + $0x190] sm:$0xff]
        %v286 = vld [vmem:[%s193 + $0x198] sm:$0xff]
        %v287 = vld [vmem:[%s193 + $0x1a0] sm:$0xff]
        %v288 = vld [vmem:[%s193 + $0x1a8] sm:$0xff]
        %v289 = vld [vmem:[%s193 + $0x1b0] sm:$0xff]
        %v290 = vld [vmem:[%s193 + $0x1b8] sm:$0xff]
        %v291 = vld [vmem:[%s193 + $0x1c0] sm:$0xff]
        %v292 = vld [vmem:[%s193 + $0x1c8] sm:$0xff]
        %v293 = vld [vmem:[%s193 + $0x1d0] sm:$0xff]
        %v294 = vld [vmem:[%s193 + $0x1d8] sm:$0xff]
        %v295 = vld [vmem:[%s193 + $0x1e0] sm:$0xff]
        %v296 = vld [vmem:[%s193 + $0x1e8] sm:$0xff]
        %v297 = vld [vmem:[%s193 + $0x1f0] sm:$0xff]
        %v298 = vld [vmem:[%s193 + $0x1f8] sm:$0xff]
        %v299 = vld [vmem:[%s193 + $0x200] sm:$0xff]
        %v300 = vld [vmem:[%s193 + $0x208] sm:$0xff]
        %v301 = vld [vmem:[%s193 + $0x210] sm:$0xff]
        %v302 = vld [vmem:[%s193 + $0x218] sm:$0xff]
        %v303 = vld [vmem:[%s193 + $0x220] sm:$0xff]
        %v304 = vld [vmem:[%s193 + $0x228] sm:$0xff]
        %v305 = vld [vmem:[%s193 + $0x230] sm:$0xff]
        %v306 = vld [vmem:[%s193 + $0x238] sm:$0xff]
        %v307 = vld [vmem:[%s193 + $0x240] sm:$0xff]
        %v308 = vld [vmem:[%s193 + $0x248] sm:$0xff]
        %v309 = vld [vmem:[%s193 + $0x250] sm:$0xff]
        %v310 = vld [vmem:[%s193 + $0x258] sm:$0xff]
        %v311 = vld [vmem:[%s193 + $0x260] sm:$0xff]
        %v312 = vld [vmem:[%s193 + $0x268] sm:$0xff]
        %v313 = vld [vmem:[%s193 + $0x270] sm:$0xff]
        %v314 = vld [vmem:[%s193 + $0x278] sm:$0xff]
        %v315 = vld [vmem:[%s193 + $0x280] sm:$0xff]
        %v316 = vld [vmem:[%s193 + $0x288] sm:$0xff]
        %v317 = vld [vmem:[%s193 + $0x290] sm:$0xff]
        %v318 = vld [vmem:[%s193 + $0x298] sm:$0xff]
        %v319 = vld [vmem:[%s193 + $0x2a0] sm:$0xff]
        %v320 = vld [vmem:[%s193 + $0x2a8] sm:$0xff]
        %v321 = vld [vmem:[%s193 + $0x2b0] sm:$0xff]
        %v322 = vld [vmem:[%s193 + $0x2b8] sm:$0xff]
        %v323 = vld [vmem:[%s193 + $0x2c0] sm:$0xff]
        %v324 = vld [vmem:[%s193 + $0x2c8] sm:$0xff]
        %v325 = vld [vmem:[%s193 + $0x2d0] sm:$0xff]
        %v326 = vld [vmem:[%s193 + $0x2d8] sm:$0xff]
        %v327 = vld [vmem:[%s193 + $0x2e0] sm:$0xff]
        %v328 = vld [vmem:[%s193 + $0x2e8] sm:$0xff]
        %v329 = vld [vmem:[%s193 + $0x2f0] sm:$0xff]
        %v330 = vld [vmem:[%s193 + $0x2f8] sm:$0xff]
        %v331 = vld [vmem:[%s193 + $0x300] sm:$0xff]
        %v332 = vld [vmem:[%s193 + $0x308] sm:$0xff]
        %v333 = vld [vmem:[%s193 + $0x310] sm:$0xff]
        %v334 = vld [vmem:[%s193 + $0x318] sm:$0xff]
        %v335 = vld [vmem:[%s193 + $0x320] sm:$0xff]
        %v336 = vld [vmem:[%s193 + $0x328] sm:$0xff]
        %v337 = vld [vmem:[%s193 + $0x330] sm:$0xff]
        %v338 = vld [vmem:[%s193 + $0x338] sm:$0xff]
        %v339 = vld [vmem:[%s193 + $0x340] sm:$0xff]
        %v340 = vld [vmem:[%s193 + $0x348] sm:$0xff]
        %v341 = vld [vmem:[%s193 + $0x350] sm:$0xff]
        %v342 = vld [vmem:[%s193 + $0x358] sm:$0xff]
        %v343 = vld [vmem:[%s193 + $0x360] sm:$0xff]
        %v344 = vld [vmem:[%s193 + $0x368] sm:$0xff]
        %v345 = vld [vmem:[%s193 + $0x370] sm:$0xff]
        %v346 = vld [vmem:[%s193 + $0x378] sm:$0xff]
        %v347 = vld [vmem:[%s193 + $0x380] sm:$0xff]
        %v348 = vld [vmem:[%s193 + $0x388] sm:$0xff]
        %v349 = vld [vmem:[%s193 + $0x390] sm:$0xff]
        %v350 = vld [vmem:[%s193 + $0x398] sm:$0xff]
        %v351 = vld [vmem:[%s193 + $0x3a0] sm:$0xff]
        %v352 = vld [vmem:[%s193 + $0x3a8] sm:$0xff]
        %v353 = vld [vmem:[%s193 + $0x3b0] sm:$0xff]
        %v354 = vld [vmem:[%s193 + $0x3b8] sm:$0xff]
        %v355 = vld [vmem:[%s193 + $0x3c0] sm:$0xff]
        %v356 = vld [vmem:[%s193 + $0x3c8] sm:$0xff]
        %v357 = vld [vmem:[%s193 + $0x3d0] sm:$0xff]
        %v358 = vld [vmem:[%s193 + $0x3d8] sm:$0xff]
        %v359 = vld [vmem:[%s193 + $0x3e0] sm:$0xff]
        %v360 = vld [vmem:[%s193 + $0x3e8] sm:$0xff]
        %v361 = vld [vmem:[%s193 + $0x3f0] sm:$0xff]
        %v362 = vld [vmem:[%s193 + $0x3f8] sm:$0xff]
        %v363 = vld [vmem:[%s193 + $0x400] sm:$0xff]
        %v364 = vld [vmem:[%s193 + $0x408] sm:$0xff]
        %v365 = vld [vmem:[%s193 + $0x410] sm:$0xff]
        %v366 = vld [vmem:[%s193 + $0x418] sm:$0xff]
        %v367 = vld [vmem:[%s193 + $0x420] sm:$0xff]
        %v368 = vld [vmem:[%s193 + $0x428] sm:$0xff]
        %v369 = vld [vmem:[%s193 + $0x430] sm:$0xff]
        %v370 = vld [vmem:[%s193 + $0x438] sm:$0xff]
        %v371 = vld [vmem:[#allocation5] sm:$0xff]
        %v372 = vld [vmem:[#allocation5 + $0x8] sm:$0xff]
        %v373 = vld [vmem:[#allocation5 + $0x10] sm:$0xff]
        %v374 = vld [vmem:[#allocation5 + $0x18] sm:$0xff]
        %v375 = vld [vmem:[#allocation5 + $0x20] sm:$0xff]
        %v376 = vld [vmem:[#allocation5 + $0x28] sm:$0xff]
        %v377 = vld [vmem:[#allocation5 + $0x30] sm:$0xff]
        %v378 = vld [vmem:[#allocation5 + $0x38] sm:$0xff]
        %v379 = vld [vmem:[#allocation5 + $0x40] sm:$0xff]
        %v380 = vld [vmem:[#allocation5 + $0x48] sm:$0xff]
        %v381 = vld [vmem:[#allocation5 + $0x50] sm:$0xff]
        %v382 = vld [vmem:[#allocation5 + $0x58] sm:$0xff]
        %v383 = vld [vmem:[#allocation5 + $0x60] sm:$0xff]
        %v384 = vld [vmem:[#allocation5 + $0x68] sm:$0xff]
        %v385 = vld [vmem:[#allocation5 + $0x70] sm:$0xff]
        %v386 = vld [vmem:[#allocation5 + $0x78] sm:$0xff]
        %v387 = vld [vmem:[#allocation5 + $0x80] sm:$0xff]
        %v388 = vld [vmem:[#allocation5 + $0x88] sm:$0xff]
        %v389 = vld [vmem:[#allocation5 + $0x90] sm:$0xff]
        %v390 = vld [vmem:[#allocation5 + $0x98] sm:$0xff]
        %v391 = vld [vmem:[#allocation5 + $0xa0] sm:$0xff]
        %v392 = vld [vmem:[#allocation5 + $0xa8] sm:$0xff]
        %v393 = vld [vmem:[#allocation5 + $0xb0] sm:$0xff]
        %v394 = vld [vmem:[#allocation5 + $0xb8] sm:$0xff]
        %v395 = vld [vmem:[#allocation5 + $0xc0] sm:$0xff]
        %v396 = vld [vmem:[#allocation5 + $0xc8] sm:$0xff]
        %v397 = vld [vmem:[#allocation5 + $0xd0] sm:$0xff]
        %v398 = vld [vmem:[#allocation5 + $0xd8] sm:$0xff]
        %v399 = vld [vmem:[#allocation5 + $0xe0] sm:$0xff]
        %v400 = vld [vmem:[#allocation5 + $0xe8] sm:$0xff]
        %v401 = vld [vmem:[#allocation5 + $0xf0] sm:$0xff]
        %v402 = vld [vmem:[#allocation5 + $0xf8] sm:$0xff]
        %v403 = vld [vmem:[#allocation5 + $0x100] sm:$0xff]
        %v404 = vld [vmem:[#allocation5 + $0x108] sm:$0xff]
        %v405 = vld [vmem:[#allocation5 + $0x110] sm:$0xff]
        %v406 = vld [vmem:[#allocation5 + $0x118] sm:$0xff]
        %v407 = vld [vmem:[#allocation5 + $0x120] sm:$0xff]
        %v408 = vld [vmem:[#allocation5 + $0x128] sm:$0xff]
        %v409 = vld [vmem:[#allocation5 + $0x130] sm:$0xff]
        %v410 = vld [vmem:[#allocation5 + $0x138] sm:$0xff]
        %v411 = vld [vmem:[#allocation5 + $0x140] sm:$0xff]
        %v412 = vld [vmem:[#allocation5 + $0x148] sm:$0xff]
        %v413 = vld [vmem:[#allocation5 + $0x150] sm:$0xff]
        %v414 = vld [vmem:[#allocation5 + $0x158] sm:$0xff]
        %v415 = vld [vmem:[#allocation5 + $0x160] sm:$0xff]
        %v416 = vld [vmem:[#allocation5 + $0x168] sm:$0xff]
        %v417 = vld [vmem:[#allocation5 + $0x170] sm:$0xff]
        %v418 = vld [vmem:[#allocation5 + $0x178] sm:$0xff]
        %v419 = vld [vmem:[#allocation5 + $0x180] sm:$0xff]
        %v420 = vld [vmem:[#allocation5 + $0x188] sm:$0xff]
        %v421 = vld [vmem:[#allocation5 + $0x190] sm:$0xff]
        %v422 = vld [vmem:[#allocation5 + $0x198] sm:$0xff]
        %v423 = vld [vmem:[#allocation5 + $0x1a0] sm:$0xff]
        %v424 = vld [vmem:[#allocation5 + $0x1a8] sm:$0xff]
        %v425 = vld [vmem:[#allocation5 + $0x1b0] sm:$0xff]
        %v426 = vld [vmem:[#allocation5 + $0x1b8] sm:$0xff]
        %v427 = vld [vmem:[#allocation5 + $0x1c0] sm:$0xff]
        %v428 = vld [vmem:[#allocation5 + $0x1c8] sm:$0xff]
        %v429 = vld [vmem:[#allocation5 + $0x1d0] sm:$0xff]
        %v430 = vld [vmem:[#allocation5 + $0x1d8] sm:$0xff]
        %v431 = vld [vmem:[#allocation5 + $0x1e0] sm:$0xff]
        %v432 = vld [vmem:[#allocation5 + $0x1e8] sm:$0xff]
        %v433 = vld [vmem:[#allocation5 + $0x1f0] sm:$0xff]
        %v434 = vld [vmem:[#allocation5 + $0x1f8] sm:$0xff]
        %v435 = vld [vmem:[#allocation5 + $0x200] sm:$0xff]
        %v436 = vld [vmem:[#allocation5 + $0x208] sm:$0xff]
        %v437 = vld [vmem:[#allocation5 + $0x210] sm:$0xff]
        %v438 = vld [vmem:[#allocation5 + $0x218] sm:$0xff]
        %v439 = vld [vmem:[#allocation5 + $0x220] sm:$0xff]
        %v440 = vld [vmem:[#allocation5 + $0x228] sm:$0xff]
        %v441 = vld [vmem:[#allocation5 + $0x230] sm:$0xff]
        %v442 = vld [vmem:[#allocation5 + $0x238] sm:$0xff]
        %v443 = vld [vmem:[#allocation5 + $0x240] sm:$0xff]
        %v444 = vld [vmem:[#allocation5 + $0x248] sm:$0xff]
        %v445 = vld [vmem:[#allocation5 + $0x250] sm:$0xff]
        %v446 = vld [vmem:[#allocation5 + $0x258] sm:$0xff]
        %v447 = vld [vmem:[#allocation5 + $0x260] sm:$0xff]
        %v448 = vld [vmem:[#allocation5 + $0x268] sm:$0xff]
        %v449 = vld [vmem:[#allocation5 + $0x270] sm:$0xff]
        %v450 = vld [vmem:[#allocation5 + $0x278] sm:$0xff]
        %v451 = vld [vmem:[#allocation5 + $0x280] sm:$0xff]
        %v452 = vld [vmem:[#allocation5 + $0x288] sm:$0xff]
        %v453 = vld [vmem:[#allocation5 + $0x290] sm:$0xff]
        %v454 = vld [vmem:[#allocation5 + $0x298] sm:$0xff]
        %v455 = vld [vmem:[#allocation5 + $0x2a0] sm:$0xff]
        %v456 = vld [vmem:[#allocation5 + $0x2a8] sm:$0xff]
        %v457 = vld [vmem:[#allocation5 + $0x2b0] sm:$0xff]
        %v458 = vld [vmem:[#allocation5 + $0x2b8] sm:$0xff]
        %v459 = vld [vmem:[#allocation5 + $0x2c0] sm:$0xff]
        %v460 = vld [vmem:[#allocation5 + $0x2c8] sm:$0xff]
        %v461 = vld [vmem:[#allocation5 + $0x2d0] sm:$0xff]
        %v462 = vld [vmem:[#allocation5 + $0x2d8] sm:$0xff]
        %v463 = vld [vmem:[#allocation5 + $0x2e0] sm:$0xff]
        %v464 = vld [vmem:[#allocation5 + $0x2e8] sm:$0xff]
        %v465 = vld [vmem:[#allocation5 + $0x2f0] sm:$0xff]
        %v466 = vld [vmem:[#allocation5 + $0x2f8] sm:$0xff]
        %v467 = vld [vmem:[#allocation5 + $0x300] sm:$0xff]
        %v468 = vld [vmem:[#allocation5 + $0x308] sm:$0xff]
        %v469 = vld [vmem:[#allocation5 + $0x310] sm:$0xff]
        %v470 = vld [vmem:[#allocation5 + $0x318] sm:$0xff]
        %v471 = vld [vmem:[#allocation5 + $0x320] sm:$0xff]
        %v472 = vld [vmem:[#allocation5 + $0x328] sm:$0xff]
        %v473 = vld [vmem:[#allocation5 + $0x330] sm:$0xff]
        %v474 = vld [vmem:[#allocation5 + $0x338] sm:$0xff]
        %v475 = vld [vmem:[#allocation5 + $0x340] sm:$0xff]
        %v476 = vld [vmem:[#allocation5 + $0x348] sm:$0xff]
        %v477 = vld [vmem:[#allocation5 + $0x350] sm:$0xff]
        %v478 = vld [vmem:[#allocation5 + $0x358] sm:$0xff]
        %v479 = vld [vmem:[#allocation5 + $0x360] sm:$0xff]
        %v480 = vld [vmem:[#allocation5 + $0x368] sm:$0xff]
        %v481 = vld [vmem:[#allocation5 + $0x370] sm:$0xff]
        %v482 = vld [vmem:[#allocation5 + $0x378] sm:$0xff]
        %v483 = vld [vmem:[#allocation5 + $0x380] sm:$0xff]
        %v484 = vld [vmem:[#allocation5 + $0x388] sm:$0xff]
        %v485 = vld [vmem:[#allocation5 + $0x390] sm:$0xff]
        %v486 = vld [vmem:[#allocation5 + $0x398] sm:$0xff]
        %v487 = vld [vmem:[#allocation5 + $0x3a0] sm:$0xff]
        %v488 = vld [vmem:[#allocation5 + $0x3a8] sm:$0xff]
        %v489 = vld [vmem:[#allocation5 + $0x3b0] sm:$0xff]
        %v490 = vld [vmem:[#allocation5 + $0x3b8] sm:$0xff]
        %v491 = vld [vmem:[#allocation5 + $0x3c0] sm:$0xff]
        %v492 = vld [vmem:[#allocation5 + $0x3c8] sm:$0xff]
        %v493 = vld [vmem:[#allocation5 + $0x3d0] sm:$0xff]
        %v494 = vld [vmem:[#allocation5 + $0x3d8] sm:$0xff]
        %v495 = vld [vmem:[#allocation5 + $0x3e0] sm:$0xff]
        %v496 = vld [vmem:[#allocation5 + $0x3e8] sm:$0xff]
        %v497 = vld [vmem:[#allocation5 + $0x3f0] sm:$0xff]
        %v498 = vld [vmem:[#allocation5 + $0x3f8] sm:$0xff]
        %v499 = vld [vmem:[#allocation7] sm:$0x1]
        %v501 = vlaneseq
        %v502 = vshrl.u32 %v501, 7
        %v503 = vsub.s32 0, %v502
        %v504 = vrot.slane %v499, %v503
        %506 = vmatprep.subr.mxu0 0.0
        %507 = vmatpush1.msra.mxu0 %v371
        %508 = vmatprep.subr.mxu0 0.0
        %509 = vmatpush1.msra.mxu0 %v372
        %510 = vmatprep.subr.mxu0 0.0
        %511 = vmatpush1.msra.mxu0 %v373
        %512 = vmatprep.subr.mxu0 0.0
        %513 = vmatpush1.msra.mxu0 %v374
        %514 = vmatprep.subr.mxu0 0.0
        %515 = vmatpush1.msra.mxu0 %v375
        %516 = vmatprep.subr.mxu0 0.0
        %517 = vmatpush1.msra.mxu0 %v376
        %518 = vmatprep.subr.mxu0 0.0
        %519 = vmatpush1.msra.mxu0 %v377
        %520 = vmatprep.subr.mxu0 0.0
        %521 = vmatpush1.msra.mxu0 %v378
        %522 = vmatprep.subr.mxu0 0.0
        %523 = vmatpush1.msra.mxu0 %v379
        %524 = vmatprep.subr.mxu0 0.0
        %525 = vmatpush1.msra.mxu0 %v380
        %526 = vmatprep.subr.mxu0 0.0
        %527 = vmatpush1.msra.mxu0 %v381
        %528 = vmatprep.subr.mxu0 0.0
        %529 = vmatpush1.msra.mxu0 %v382
        %530 = vmatprep.subr.mxu0 0.0
        %531 = vmatpush1.msra.mxu0 %v383
        %532 = vmatprep.subr.mxu0 0.0
        %533 = vmatpush1.msra.mxu0 %v384
        %534 = vmatprep.subr.mxu0 0.0
        %535 = vmatpush1.msra.mxu0 %v385
        %536 = vmatprep.subr.mxu0 0.0
        %537 = vmatpush1.msra.mxu0 %v386
        %538 = vmatprep.subr.mxu0 0.0
        %539 = vmatpush1.msra.mxu0 %v387
        %540 = vmatprep.subr.mxu0 0.0
        %541 = vmatpush1.msra.mxu0 %v388
        %542 = vmatprep.subr.mxu0 0.0
        %543 = vmatpush1.msra.mxu0 %v389
        %544 = vmatprep.subr.mxu0 0.0
        %545 = vmatpush1.msra.mxu0 %v390
        %546 = vmatprep.subr.mxu0 0.0
        %547 = vmatpush1.msra.mxu0 %v391
        %548 = vmatprep.subr.mxu0 0.0
        %549 = vmatpush1.msra.mxu0 %v392
        %550 = vmatprep.subr.mxu0 0.0
        %551 = vmatpush1.msra.mxu0 %v393
        %552 = vmatprep.subr.mxu0 0.0
        %553 = vmatpush1.msra.mxu0 %v394
        %554 = vmatprep.subr.mxu0 0.0
        %555 = vmatpush1.msra.mxu0 %v395
        %556 = vmatprep.subr.mxu0 0.0
        %557 = vmatpush1.msra.mxu0 %v396
        %558 = vmatprep.subr.mxu0 0.0
        %559 = vmatpush1.msra.mxu0 %v397
        %560 = vmatprep.subr.mxu0 0.0
        %561 = vmatpush1.msra.mxu0 %v398
        %562 = vmatprep.subr.mxu0 0.0
        %563 = vmatpush1.msra.mxu0 %v399
        %564 = vmatprep.subr.mxu0 0.0
        %565 = vmatpush1.msra.mxu0 %v400
        %566 = vmatprep.subr.mxu0 0.0
        %567 = vmatpush1.msra.mxu0 %v401
        %568 = vmatprep.subr.mxu0 0.0
        %569 = vmatpush1.msra.mxu0 %v402
        %570 = vmatprep.mubr.f32.mxu0 %v236
        %571 = vmatmul.mubr.f32.gmra.mrb[0].mxu0 %v235
        %v572 = vpop.f32.mrb[0].mxu0
        %v573 = vadd.f32 %v504, %v572
        %v574 = vpop.f32.mrb[0].mxu0
        %575 = vmatprep.mubr.f32.mxu0 %v244
        %576 = vmatmul.mubr.f32.gmra.mrb[0].mxu0 %v243
        %v577 = vpop.f32.mrb[0].mxu0
        %v578 = vadd.f32 %v504, %v577
        %v579 = vpop.f32.mrb[0].mxu0
        %580 = vmatprep.mubr.f32.mxu0 %v252
        %581 = vmatmul.mubr.f32.gmra.mrb[0].mxu0 %v251
        %v582 = vpop.f32.mrb[0].mxu0
        %v583 = vadd.f32 %v504, %v582
        %v584 = vpop.f32.mrb[0].mxu0
        %585 = vmatprep.mubr.f32.mxu0 %v260
        %586 = vmatmul.mubr.f32.gmra.mrb[0].mxu0 %v259
        %v587 = vpop.f32.mrb[0].mxu0
        %v588 = vadd.f32 %v504, %v587
        %v589 = vpop.f32.mrb[0].mxu0
        %590 = vmatprep.mubr.f32.mxu0 %v268
        %591 = vmatmul.mubr.f32.gmra.mrb[0].mxu0 %v267
        %v592 = vpop.f32.mrb[0].mxu0
        %v593 = vadd.f32 %v504, %v592
        %v594 = vpop.f32.mrb[0].mxu0
        %595 = vmatprep.mubr.f32.mxu0 %v276
        %596 = vmatmul.mubr.f32.gmra.mrb[0].mxu0 %v275
        %v597 = vpop.f32.mrb[0].mxu0
        %v598 = vadd.f32 %v504, %v597
        %v599 = vpop.f32.mrb[0].mxu0
        %600 = vmatprep.mubr.f32.mxu0 %v284
        %601 = vmatmul.mubr.f32.gmra.mrb[0].mxu0 %v283
        %v602 = vpop.f32.mrb[0].mxu0
        %v603 = vadd.f32 %v504, %v602
        %v604 = vpop.f32.mrb[0].mxu0
        %605 = vmatprep.mubr.f32.mxu0 %v292
        %606 = vmatmul.mubr.f32.gmra.mrb[0].mxu0 %v291
        %v607 = vpop.f32.mrb[0].mxu0
        %v608 = vadd.f32 %v504, %v607
        %v609 = vpop.f32.mrb[0].mxu0
        %610 = vmatprep.mubr.f32.mxu0 %v300
        %611 = vmatmul.mubr.f32.gmra.mrb[0].mxu0 %v299
        %v612 = vpop.f32.mrb[0].mxu0
        %v613 = vadd.f32 %v504, %v612
        %v614 = vpop.f32.mrb[0].mxu0
        %615 = vmatprep.mubr.f32.mxu0 %v308
        %616 = vmatmul.mubr.f32.gmra.mrb[0].mxu0 %v307
        %v617 = vpop.f32.mrb[0].mxu0
        %v618 = vadd.f32 %v504, %v617
        %v619 = vpop.f32.mrb[0].mxu0
        %620 = vmatprep.mubr.f32.mxu0 %v316
        %621 = vmatmul.mubr.f32.gmra.mrb[0].mxu0 %v315
        %v622 = vpop.f32.mrb[0].mxu0
        %v623 = vadd.f32 %v504, %v622
        %v624 = vpop.f32.mrb[0].mxu0
        %625 = vmatprep.mubr.f32.mxu0 %v324
        %626 = vmatmul.mubr.f32.gmra.mrb[0].mxu0 %v323
        %v627 = vpop.f32.mrb[0].mxu0
        %v628 = vadd.f32 %v504, %v627
        %v629 = vpop.f32.mrb[0].mxu0
        %630 = vmatprep.mubr.f32.mxu0 %v332
        %631 = vmatmul.mubr.f32.gmra.mrb[0].mxu0 %v331
        %v632 = vpop.f32.mrb[0].mxu0
        %v633 = vadd.f32 %v504, %v632
        %v634 = vpop.f32.mrb[0].mxu0
        %635 = vmatprep.mubr.f32.mxu0 %v340
        %636 = vmatmul.mubr.f32.gmra.mrb[0].mxu0 %v339
        %v637 = vpop.f32.mrb[0].mxu0
        %v638 = vadd.f32 %v504, %v637
        %v639 = vpop.f32.mrb[0].mxu0
        %640 = vmatprep.mubr.f32.mxu0 %v348
        %641 = vmatmul.mubr.f32.gmra.mrb[0].mxu0 %v347
        %v642 = vpop.f32.mrb[0].mxu0
        %v643 = vadd.f32 %v504, %v642
        %v644 = vpop.f32.mrb[0].mxu0
        %645 = vmatprep.mubr.f32.mxu0 %v356
        %646 = vmatmul.mubr.f32.gmra.mrb[0].mxu0 %v355
        %v647 = vpop.f32.mrb[0].mxu0
        %v648 = vadd.f32 %v504, %v647
        %v649 = vpop.f32.mrb[0].mxu0
        %650 = vmatprep.mubr.f32.mxu0 %v364
        %651 = vmatmul.mubr.f32.gmra.mrb[0].mxu0 %v363
        %v652 = vpop.f32.mrb[0].mxu0
        %v653 = vadd.f32 %v504, %v652
        %v654 = vpop.f32.mrb[0].mxu0
        %655 = vdwg.mxu0
        %656 = vmatprep.subr.mxu0 0.0
        %657 = vmatpush1.msra.mxu0 %v403
        %658 = vmatprep.subr.mxu0 0.0
        %659 = vmatpush1.msra.mxu0 %v404
        %660 = vmatprep.subr.mxu0 0.0
        %661 = vmatpush1.msra.mxu0 %v405
        %662 = vmatprep.subr.mxu0 0.0
        %663 = vmatpush1.msra.mxu0 %v406
        %664 = vmatprep.subr.mxu0 0.0
        %665 = vmatpush1.msra.mxu0 %v407
        %666 = vmatprep.subr.mxu0 0.0
        %667 = vmatpush1.msra.mxu0 %v408
        %668 = vmatprep.subr.mxu0 0.0
        %669 = vmatpush1.msra.mxu0 %v409
        %670 = vmatprep.subr.mxu0 0.0
        %671 = vmatpush1.msra.mxu0 %v410
        %672 = vmatprep.subr.mxu0 0.0
        %673 = vmatpush1.msra.mxu0 %v411
        %674 = vmatprep.subr.mxu0 0.0
        %675 = vmatpush1.msra.mxu0 %v412
        %676 = vmatprep.subr.mxu0 0.0
        %677 = vmatpush1.msra.mxu0 %v413
        %678 = vmatprep.subr.mxu0 0.0
        %679 = vmatpush1.msra.mxu0 %v414
        %680 = vmatprep.subr.mxu0 0.0
        %681 = vmatpush1.msra.mxu0 %v415
        %682 = vmatprep.subr.mxu0 0.0
        %683 = vmatpush1.msra.mxu0 %v416
        %684 = vmatprep.subr.mxu0 0.0
        %685 = vmatpush1.msra.mxu0 %v417
        %686 = vmatprep.subr.mxu0 0.0
        %687 = vmatpush1.msra.mxu0 %v418
        %688 = vmatprep.subr.mxu0 0.0
        %689 = vmatpush1.msra.mxu0 %v419
        %690 = vmatprep.subr.mxu0 0.0
        %691 = vmatpush1.msra.mxu0 %v420
        %692 = vmatprep.subr.mxu0 0.0
        %693 = vmatpush1.msra.mxu0 %v421
        %694 = vmatprep.subr.mxu0 0.0
        %695 = vmatpush1.msra.mxu0 %v422
        %696 = vmatprep.subr.mxu0 0.0
        %697 = vmatpush1.msra.mxu0 %v423
        %698 = vmatprep.subr.mxu0 0.0
        %699 = vmatpush1.msra.mxu0 %v424
        %700 = vmatprep.subr.mxu0 0.0
        %701 = vmatpush1.msra.mxu0 %v425
        %702 = vmatprep.subr.mxu0 0.0
        %703 = vmatpush1.msra.mxu0 %v426
        %704 = vmatprep.subr.mxu0 0.0
        %705 = vmatpush1.msra.mxu0 %v427
        %706 = vmatprep.subr.mxu0 0.0
        %707 = vmatpush1.msra.mxu0 %v428
        %708 = vmatprep.subr.mxu0 0.0
        %709 = vmatpush1.msra.mxu0 %v429
        %710 = vmatprep.subr.mxu0 0.0
        %711 = vmatpush1.msra.mxu0 %v430
        %712 = vmatprep.subr.mxu0 0.0
        %713 = vmatpush1.msra.mxu0 %v431
        %714 = vmatprep.subr.mxu0 0.0
        %715 = vmatpush1.msra.mxu0 %v432
        %716 = vmatprep.subr.mxu0 0.0
        %717 = vmatpush1.msra.mxu0 %v433
        %718 = vmatprep.subr.mxu0 0.0
        %719 = vmatpush1.msra.mxu0 %v434
        %720 = vmatprep.mubr.f32.mxu0 %v238
        %721 = vmatmul.mubr.f32.gmra.mrb[0].mxu0 %v237
        %v722 = vpop.f32.mrb[0].mxu0
        %v723 = vadd.f32 %v573, %v722
        %v724 = vpop.f32.mrb[0].mxu0
        %725 = vmatprep.mubr.f32.mxu0 %v246
        %726 = vmatmul.mubr.f32.gmra.mrb[0].mxu0 %v245
        %v727 = vpop.f32.mrb[0].mxu0
        %v728 = vadd.f32 %v578, %v727
        %v729 = vpop.f32.mrb[0].mxu0
        %730 = vmatprep.mubr.f32.mxu0 %v254
        %731 = vmatmul.mubr.f32.gmra.mrb[0].mxu0 %v253
        %v732 = vpop.f32.mrb[0].mxu0
        %v733 = vadd.f32 %v583, %v732
        %v734 = vpop.f32.mrb[0].mxu0
        %735 = vmatprep.mubr.f32.mxu0 %v262
        %736 = vmatmul.mubr.f32.gmra.mrb[0].mxu0 %v261
        %v737 = vpop.f32.mrb[0].mxu0
        %v738 = vadd.f32 %v588, %v737
        %v739 = vpop.f32.mrb[0].mxu0
        %740 = vmatprep.mubr.f32.mxu0 %v270
        %741 = vmatmul.mubr.f32.gmra.mrb[0].mxu0 %v269
        %v742 = vpop.f32.mrb[0].mxu0
        %v743 = vadd.f32 %v593, %v742
        %v744 = vpop.f32.mrb[0].mxu0
        %745 = vmatprep.mubr.f32.mxu0 %v278
        %746 = vmatmul.mubr.f32.gmra.mrb[0].mxu0 %v277
        %v747 = vpop.f32.mrb[0].mxu0
        %v748 = vadd.f32 %v598, %v747
        %v749 = vpop.f32.mrb[0].mxu0
        %750 = vmatprep.mubr.f32.mxu0 %v286
        %751 = vmatmul.mubr.f32.gmra.mrb[0].mxu0 %v285
        %v752 = vpop.f32.mrb[0].mxu0
        %v753 = vadd.f32 %v603, %v752
        %v754 = vpop.f32.mrb[0].mxu0
        %755 = vmatprep.mubr.f32.mxu0 %v294
        %756 = vmatmul.mubr.f32.gmra.mrb[0].mxu0 %v293
        %v757 = vpop.f32.mrb[0].mxu0
        %v758 = vadd.f32 %v608, %v757
        %v759 = vpop.f32.mrb[0].mxu0
        %760 = vmatprep.mubr.f32.mxu0 %v302
        %761 = vmatmul.mubr.f32.gmra.mrb[0].mxu0 %v301
        %v762 = vpop.f32.mrb[0].mxu0
        %v763 = vadd.f32 %v613, %v762
        %v764 = vpop.f32.mrb[0].mxu0
        %765 = vmatprep.mubr.f32.mxu0 %v310
        %766 = vmatmul.mubr.f32.gmra.mrb[0].mxu0 %v309
        %v767 = vpop.f32.mrb[0].mxu0
        %v768 = vadd.f32 %v618, %v767
        %v769 = vpop.f32.mrb[0].mxu0
        %770 = vmatprep.mubr.f32.mxu0 %v318
        %771 = vmatmul.mubr.f32.gmra.mrb[0].mxu0 %v317
        %v772 = vpop.f32.mrb[0].mxu0
        %v773 = vadd.f32 %v623, %v772
        %v774 = vpop.f32.mrb[0].mxu0
        %775 = vmatprep.mubr.f32.mxu0 %v326
        %776 = vmatmul.mubr.f32.gmra.mrb[0].mxu0 %v325
        %v777 = vpop.f32.mrb[0].mxu0
        %v778 = vadd.f32 %v628, %v777
        %v779 = vpop.f32.mrb[0].mxu0
        %780 = vmatprep.mubr.f32.mxu0 %v334
        %781 = vmatmul.mubr.f32.gmra.mrb[0].mxu0 %v333
        %v782 = vpop.f32.mrb[0].mxu0
        %v783 = vadd.f32 %v633, %v782
        %v784 = vpop.f32.mrb[0].mxu0
        %785 = vmatprep.mubr.f32.mxu0 %v342
        %786 = vmatmul.mubr.f32.gmra.mrb[0].mxu0 %v341
        %v787 = vpop.f32.mrb[0].mxu0
        %v788 = vadd.f32 %v638, %v787
        %v789 = vpop.f32.mrb[0].mxu0
        %790 = vmatprep.mubr.f32.mxu0 %v350
        %791 = vmatmul.mubr.f32.gmra.mrb[0].mxu0 %v349
        %v792 = vpop.f32.mrb[0].mxu0
        %v793 = vadd.f32 %v643, %v792
        %v794 = vpop.f32.mrb[0].mxu0
        %795 = vmatprep.mubr.f32.mxu0 %v358
        %796 = vmatmul.mubr.f32.gmra.mrb[0].mxu0 %v357
        %v797 = vpop.f32.mrb[0].mxu0
        %v798 = vadd.f32 %v648, %v797
        %v799 = vpop.f32.mrb[0].mxu0
        %800 = vmatprep.mubr.f32.mxu0 %v366
        %801 = vmatmul.mubr.f32.gmra.mrb[0].mxu0 %v365
        %v802 = vpop.f32.mrb[0].mxu0
        %v803 = vadd.f32 %v653, %v802
        %v804 = vpop.f32.mrb[0].mxu0
        %805 = vdwg.mxu0
        %806 = vmatprep.subr.mxu0 0.0
        %807 = vmatpush1.msra.mxu0 %v435
        %808 = vmatprep.subr.mxu0 0.0
        %809 = vmatpush1.msra.mxu0 %v436
        %810 = vmatprep.subr.mxu0 0.0
        %811 = vmatpush1.msra.mxu0 %v437
        %812 = vmatprep.subr.mxu0 0.0
        %813 = vmatpush1.msra.mxu0 %v438
        %814 = vmatprep.subr.mxu0 0.0
        %815 = vmatpush1.msra.mxu0 %v439
        %816 = vmatprep.subr.mxu0 0.0
        %817 = vmatpush1.msra.mxu0 %v440
        %818 = vmatprep.subr.mxu0 0.0
        %819 = vmatpush1.msra.mxu0 %v441
        %820 = vmatprep.subr.mxu0 0.0
        %821 = vmatpush1.msra.mxu0 %v442
        %822 = vmatprep.subr.mxu0 0.0
        %823 = vmatpush1.msra.mxu0 %v443
        %824 = vmatprep.subr.mxu0 0.0
        %825 = vmatpush1.msra.mxu0 %v444
        %826 = vmatprep.subr.mxu0 0.0
        %827 = vmatpush1.msra.mxu0 %v445
        %828 = vmatprep.subr.mxu0 0.0
        %829 = vmatpush1.msra.mxu0 %v446
        %830 = vmatprep.subr.mxu0 0.0
        %831 = vmatpush1.msra.mxu0 %v447
        %832 = vmatprep.subr.mxu0 0.0
        %833 = vmatpush1.msra.mxu0 %v448
        %834 = vmatprep.subr.mxu0 0.0
        %835 = vmatpush1.msra.mxu0 %v449
        %836 = vmatprep.subr.mxu0 0.0
        %837 = vmatpush1.msra.mxu0 %v450
        %838 = vmatprep.subr.mxu0 0.0
        %839 = vmatpush1.msra.mxu0 %v451
        %840 = vmatprep.subr.mxu0 0.0
        %841 = vmatpush1.msra.mxu0 %v452
        %842 = vmatprep.subr.mxu0 0.0
        %843 = vmatpush1.msra.mxu0 %v453
        %844 = vmatprep.subr.mxu0 0.0
        %845 = vmatpush1.msra.mxu0 %v454
        %846 = vmatprep.subr.mxu0 0.0
        %847 = vmatpush1.msra.mxu0 %v455
        %848 = vmatprep.subr.mxu0 0.0
        %849 = vmatpush1.msra.mxu0 %v456
        %850 = vmatprep.subr.mxu0 0.0
        %851 = vmatpush1.msra.mxu0 %v457
        %852 = vmatprep.subr.mxu0 0.0
        %853 = vmatpush1.msra.mxu0 %v458
        %854 = vmatprep.subr.mxu0 0.0
        %855 = vmatpush1.msra.mxu0 %v459
        %856 = vmatprep.subr.mxu0 0.0
        %857 = vmatpush1.msra.mxu0 %v460
        %858 = vmatprep.subr.mxu0 0.0
        %859 = vmatpush1.msra.mxu0 %v461
        %860 = vmatprep.subr.mxu0 0.0
        %861 = vmatpush1.msra.mxu0 %v462
        %862 = vmatprep.subr.mxu0 0.0
        %863 = vmatpush1.msra.mxu0 %v463
        %864 = vmatprep.subr.mxu0 0.0
        %865 = vmatpush1.msra.mxu0 %v464
        %866 = vmatprep.subr.mxu0 0.0
        %867 = vmatpush1.msra.mxu0 %v465
        %868 = vmatprep.subr.mxu0 0.0
        %869 = vmatpush1.msra.mxu0 %v466
        %870 = vmatprep.mubr.f32.mxu0 %v240
        %871 = vmatmul.mubr.f32.gmra.mrb[0].mxu0 %v239
        %v872 = vpop.f32.mrb[0].mxu0
        %v873 = vadd.f32 %v723, %v872
        %v874 = vpop.f32.mrb[0].mxu0
        %875 = vmatprep.mubr.f32.mxu0 %v248
        %876 = vmatmul.mubr.f32.gmra.mrb[0].mxu0 %v247
        %v877 = vpop.f32.mrb[0].mxu0
        %v878 = vadd.f32 %v728, %v877
        %v879 = vpop.f32.mrb[0].mxu0
        %880 = vmatprep.mubr.f32.mxu0 %v256
        %881 = vmatmul.mubr.f32.gmra.mrb[0].mxu0 %v255
        %v882 = vpop.f32.mrb[0].mxu0
        %v883 = vadd.f32 %v733, %v882
        %v884 = vpop.f32.mrb[0].mxu0
        %885 = vmatprep.mubr.f32.mxu0 %v264
        %886 = vmatmul.mubr.f32.gmra.mrb[0].mxu0 %v263
        %v887 = vpop.f32.mrb[0].mxu0
        %v888 = vadd.f32 %v738, %v887
        %v889 = vpop.f32.mrb[0].mxu0
        %890 = vmatprep.mubr.f32.mxu0 %v272
        %891 = vmatmul.mubr.f32.gmra.mrb[0].mxu0 %v271
        %v892 = vpop.f32.mrb[0].mxu0
        %v893 = vadd.f32 %v743, %v892
        %v894 = vpop.f32.mrb[0].mxu0
        %895 = vmatprep.mubr.f32.mxu0 %v280
        %896 = vmatmul.mubr.f32.gmra.mrb[0].mxu0 %v279
        %v897 = vpop.f32.mrb[0].mxu0
        %v898 = vadd.f32 %v748, %v897
        %v899 = vpop.f32.mrb[0].mxu0
        %900 = vmatprep.mubr.f32.mxu0 %v288
        %901 = vmatmul.mubr.f32.gmra.mrb[0].mxu0 %v287
        %v902 = vpop.f32.mrb[0].mxu0
        %v903 = vadd.f32 %v753, %v902
        %v904 = vpop.f32.mrb[0].mxu0
        %905 = vmatprep.mubr.f32.mxu0 %v296
        %906 = vmatmul.mubr.f32.gmra.mrb[0].mxu0 %v295
        %v907 = vpop.f32.mrb[0].mxu0
        %v908 = vadd.f32 %v758, %v907
        %v909 = vpop.f32.mrb[0].mxu0
        %910 = vmatprep.mubr.f32.mxu0 %v304
        %911 = vmatmul.mubr.f32.gmra.mrb[0].mxu0 %v303
        %v912 = vpop.f32.mrb[0].mxu0
        %v913 = vadd.f32 %v763, %v912
        %v914 = vpop.f32.mrb[0].mxu0
        %915 = vmatprep.mubr.f32.mxu0 %v312
        %916 = vmatmul.mubr.f32.gmra.mrb[0].mxu0 %v311
        %v917 = vpop.f32.mrb[0].mxu0
        %v918 = vadd.f32 %v768, %v917
        %v919 = vpop.f32.mrb[0].mxu0
        %920 = vmatprep.mubr.f32.mxu0 %v320
        %921 = vmatmul.mubr.f32.gmra.mrb[0].mxu0 %v319
        %v922 = vpop.f32.mrb[0].mxu0
        %v923 = vadd.f32 %v773, %v922
        %v924 = vpop.f32.mrb[0].mxu0
        %925 = vmatprep.mubr.f32.mxu0 %v328
        %926 = vmatmul.mubr.f32.gmra.mrb[0].mxu0 %v327
        %v927 = vpop.f32.mrb[0].mxu0
        %v928 = vadd.f32 %v778, %v927
        %v929 = vpop.f32.mrb[0].mxu0
        %930 = vmatprep.mubr.f32.mxu0 %v336
        %931 = vmatmul.mubr.f32.gmra.mrb[0].mxu0 %v335
        %v932 = vpop.f32.mrb[0].mxu0
        %v933 = vadd.f32 %v783, %v932
        %v934 = vpop.f32.mrb[0].mxu0
        %935 = vmatprep.mubr.f32.mxu0 %v344
        %936 = vmatmul.mubr.f32.gmra.mrb[0].mxu0 %v343
        %v937 = vpop.f32.mrb[0].mxu0
        %v938 = vadd.f32 %v788, %v937
        %v939 = vpop.f32.mrb[0].mxu0
        %940 = vmatprep.mubr.f32.mxu0 %v352
        %941 = vmatmul.mubr.f32.gmra.mrb[0].mxu0 %v351
        %v942 = vpop.f32.mrb[0].mxu0
        %v943 = vadd.f32 %v793, %v942
        %v944 = vpop.f32.mrb[0].mxu0
        %945 = vmatprep.mubr.f32.mxu0 %v360
        %946 = vmatmul.mubr.f32.gmra.mrb[0].mxu0 %v359
        %v947 = vpop.f32.mrb[0].mxu0
        %v948 = vadd.f32 %v798, %v947
        %v949 = vpop.f32.mrb[0].mxu0
        %950 = vmatprep.mubr.f32.mxu0 %v368
        %951 = vmatmul.mubr.f32.gmra.mrb[0].mxu0 %v367
        %v952 = vpop.f32.mrb[0].mxu0
        %v953 = vadd.f32 %v803, %v952
        %v954 = vpop.f32.mrb[0].mxu0
        %955 = vdwg.mxu0
        %956 = vmatprep.subr.mxu0 0.0
        %957 = vmatpush1.msra.mxu0 %v467
        %958 = vmatprep.subr.mxu0 0.0
        %959 = vmatpush1.msra.mxu0 %v468
        %960 = vmatprep.subr.mxu0 0.0
        %961 = vmatpush1.msra.mxu0 %v469
        %962 = vmatprep.subr.mxu0 0.0
        %963 = vmatpush1.msra.mxu0 %v470
        %964 = vmatprep.subr.mxu0 0.0
        %965 = vmatpush1.msra.mxu0 %v471
        %966 = vmatprep.subr.mxu0 0.0
        %967 = vmatpush1.msra.mxu0 %v472
        %968 = vmatprep.subr.mxu0 0.0
        %969 = vmatpush1.msra.mxu0 %v473
        %970 = vmatprep.subr.mxu0 0.0
        %971 = vmatpush1.msra.mxu0 %v474
        %972 = vmatprep.subr.mxu0 0.0
        %973 = vmatpush1.msra.mxu0 %v475
        %974 = vmatprep.subr.mxu0 0.0
        %975 = vmatpush1.msra.mxu0 %v476
        %976 = vmatprep.subr.mxu0 0.0
        %977 = vmatpush1.msra.mxu0 %v477
        %978 = vmatprep.subr.mxu0 0.0
        %979 = vmatpush1.msra.mxu0 %v478
        %980 = vmatprep.subr.mxu0 0.0
        %981 = vmatpush1.msra.mxu0 %v479
        %982 = vmatprep.subr.mxu0 0.0
        %983 = vmatpush1.msra.mxu0 %v480
        %984 = vmatprep.subr.mxu0 0.0
        %985 = vmatpush1.msra.mxu0 %v481
        %986 = vmatprep.subr.mxu0 0.0
        %987 = vmatpush1.msra.mxu0 %v482
        %988 = vmatprep.subr.mxu0 0.0
        %989 = vmatpush1.msra.mxu0 %v483
        %990 = vmatprep.subr.mxu0 0.0
        %991 = vmatpush1.msra.mxu0 %v484
        %992 = vmatprep.subr.mxu0 0.0
        %993 = vmatpush1.msra.mxu0 %v485
        %994 = vmatprep.subr.mxu0 0.0
        %995 = vmatpush1.msra.mxu0 %v486
        %996 = vmatprep.subr.mxu0 0.0
        %997 = vmatpush1.msra.mxu0 %v487
        %998 = vmatprep.subr.mxu0 0.0
        %999 = vmatpush1.msra.mxu0 %v488
        %1000 = vmatprep.subr.mxu0 0.0
        %1001 = vmatpush1.msra.mxu0 %v489
        %1002 = vmatprep.subr.mxu0 0.0
        %1003 = vmatpush1.msra.mxu0 %v490
        %1004 = vmatprep.subr.mxu0 0.0
        %1005 = vmatpush1.msra.mxu0 %v491
        %1006 = vmatprep.subr.mxu0 0.0
        %1007 = vmatpush1.msra.mxu0 %v492
        %1008 = vmatprep.subr.mxu0 0.0
        %1009 = vmatpush1.msra.mxu0 %v493
        %1010 = vmatprep.subr.mxu0 0.0
        %1011 = vmatpush1.msra.mxu0 %v494
        %1012 = vmatprep.subr.mxu0 0.0
        %1013 = vmatpush1.msra.mxu0 %v495
        %1014 = vmatprep.subr.mxu0 0.0
        %1015 = vmatpush1.msra.mxu0 %v496
        %1016 = vmatprep.subr.mxu0 0.0
        %1017 = vmatpush1.msra.mxu0 %v497
        %1018 = vmatprep.subr.mxu0 0.0
        %1019 = vmatpush1.msra.mxu0 %v498
        %1020 = vmatprep.mubr.f32.mxu0 %v242
        %1021 = vmatmul.mubr.f32.gmra.mrb[0].mxu0 %v241
        %v1022 = vpop.f32.mrb[0].mxu0
        %v1023 = vadd.f32 %v873, %v1022
        %v1024 = vpop.f32.mrb[0].mxu0
        %1025 = vmatprep.mubr.f32.mxu0 %v250
        %1026 = vmatmul.mubr.f32.gmra.mrb[0].mxu0 %v249
        %v1027 = vpop.f32.mrb[0].mxu0
        %v1028 = vadd.f32 %v878, %v1027
        %v1029 = vpop.f32.mrb[0].mxu0
        %1030 = vmatprep.mubr.f32.mxu0 %v258
        %1031 = vmatmul.mubr.f32.gmra.mrb[0].mxu0 %v257
        %v1032 = vpop.f32.mrb[0].mxu0
        %v1033 = vadd.f32 %v883, %v1032
        %v1034 = vpop.f32.mrb[0].mxu0
        %1035 = vmatprep.mubr.f32.mxu0 %v266
        %1036 = vmatmul.mubr.f32.gmra.mrb[0].mxu0 %v265
        %v1037 = vpop.f32.mrb[0].mxu0
        %v1038 = vadd.f32 %v888, %v1037
        %v1039 = vpop.f32.mrb[0].mxu0
        %1040 = vmatprep.mubr.f32.mxu0 %v274
        %1041 = vmatmul.mubr.f32.gmra.mrb[0].mxu0 %v273
        %v1042 = vpop.f32.mrb[0].mxu0
        %v1043 = vadd.f32 %v893, %v1042
        %v1044 = vpop.f32.mrb[0].mxu0
        %1045 = vmatprep.mubr.f32.mxu0 %v282
        %1046 = vmatmul.mubr.f32.gmra.mrb[0].mxu0 %v281
        %v1047 = vpop.f32.mrb[0].mxu0
        %v1048 = vadd.f32 %v898, %v1047
        %v1049 = vpop.f32.mrb[0].mxu0
        %1050 = vmatprep.mubr.f32.mxu0 %v290
        %1051 = vmatmul.mubr.f32.gmra.mrb[0].mxu0 %v289
        %v1052 = vpop.f32.mrb[0].mxu0
        %v1053 = vadd.f32 %v903, %v1052
        %v1054 = vpop.f32.mrb[0].mxu0
        %1055 = vmatprep.mubr.f32.mxu0 %v298
        %1056 = vmatmul.mubr.f32.gmra.mrb[0].mxu0 %v297
        %v1057 = vpop.f32.mrb[0].mxu0
        %v1058 = vadd.f32 %v908, %v1057
        %v1059 = vpop.f32.mrb[0].mxu0
        %1060 = vmatprep.mubr.f32.mxu0 %v306
        %1061 = vmatmul.mubr.f32.gmra.mrb[0].mxu0 %v305
        %v1062 = vpop.f32.mrb[0].mxu0
        %v1063 = vadd.f32 %v913, %v1062
        %v1064 = vpop.f32.mrb[0].mxu0
        %1065 = vmatprep.mubr.f32.mxu0 %v314
        %1066 = vmatmul.mubr.f32.gmra.mrb[0].mxu0 %v313
        %v1067 = vpop.f32.mrb[0].mxu0
        %v1068 = vadd.f32 %v918, %v1067
        %v1069 = vpop.f32.mrb[0].mxu0
        %1070 = vmatprep.mubr.f32.mxu0 %v322
        %1071 = vmatmul.mubr.f32.gmra.mrb[0].mxu0 %v321
        %v1072 = vpop.f32.mrb[0].mxu0
        %v1073 = vadd.f32 %v923, %v1072
        %v1074 = vpop.f32.mrb[0].mxu0
        %1075 = vmatprep.mubr.f32.mxu0 %v330
        %1076 = vmatmul.mubr.f32.gmra.mrb[0].mxu0 %v329
        %v1077 = vpop.f32.mrb[0].mxu0
        %v1078 = vadd.f32 %v928, %v1077
        %v1079 = vpop.f32.mrb[0].mxu0
        %1080 = vmatprep.mubr.f32.mxu0 %v338
        %1081 = vmatmul.mubr.f32.gmra.mrb[0].mxu0 %v337
        %v1082 = vpop.f32.mrb[0].mxu0
        %v1083 = vadd.f32 %v933, %v1082
        %v1084 = vpop.f32.mrb[0].mxu0
        %1085 = vmatprep.mubr.f32.mxu0 %v346
        %1086 = vmatmul.mubr.f32.gmra.mrb[0].mxu0 %v345
        %v1087 = vpop.f32.mrb[0].mxu0
        %v1088 = vadd.f32 %v938, %v1087
        %v1089 = vpop.f32.mrb[0].mxu0
        %1090 = vmatprep.mubr.f32.mxu0 %v354
        %1091 = vmatmul.mubr.f32.gmra.mrb[0].mxu0 %v353
        %v1092 = vpop.f32.mrb[0].mxu0
        %v1093 = vadd.f32 %v943, %v1092
        %v1094 = vpop.f32.mrb[0].mxu0
        %1095 = vmatprep.mubr.f32.mxu0 %v362
        %1096 = vmatmul.mubr.f32.gmra.mrb[0].mxu0 %v361
        %v1097 = vpop.f32.mrb[0].mxu0
        %v1098 = vadd.f32 %v948, %v1097
        %v1099 = vpop.f32.mrb[0].mxu0
        %1100 = vmatprep.mubr.f32.mxu0 %v370
        %1101 = vmatmul.mubr.f32.gmra.mrb[0].mxu0 %v369
        %v1102 = vpop.f32.mrb[0].mxu0
        %v1103 = vadd.f32 %v953, %v1102
        %v1104 = vpop.f32.mrb[0].mxu0
        %1105 = vdwg.mxu0
        %v1106 = vmul.f32 %v1023, 0.5
        %v1107 = vmul.f32 %v1028, 0.5
        %v1108 = vmul.f32 %v1033, 0.5
        %v1109 = vmul.f32 %v1038, 0.5
        %v1110 = vmul.f32 %v1043, 0.5
        %v1111 = vmul.f32 %v1048, 0.5
        %v1112 = vmul.f32 %v1053, 0.5
        %v1113 = vmul.f32 %v1058, 0.5
        %v1114 = vmul.f32 %v1063, 0.5
        %v1115 = vmul.f32 %v1068, 0.5
        %v1116 = vmul.f32 %v1073, 0.5
        %v1117 = vmul.f32 %v1078, 0.5
        %v1118 = vmul.f32 %v1083, 0.5
        %v1119 = vmul.f32 %v1088, 0.5
        %v1120 = vmul.f32 %v1093, 0.5
        %v1121 = vmul.f32 %v1098, 0.5
        %v1122 = vmul.f32 %v1103, 0.5
        %v1123 = vmul.f32 %v1023, %v1023
        %v1124 = vmul.f32 %v1028, %v1028
        %v1125 = vmul.f32 %v1033, %v1033
        %v1126 = vmul.f32 %v1038, %v1038
        %v1127 = vmul.f32 %v1043, %v1043
        %v1128 = vmul.f32 %v1048, %v1048
        %v1129 = vmul.f32 %v1053, %v1053
        %v1130 = vmul.f32 %v1058, %v1058
        %v1131 = vmul.f32 %v1063, %v1063
        %v1132 = vmul.f32 %v1068, %v1068
        %v1133 = vmul.f32 %v1073, %v1073
        %v1134 = vmul.f32 %v1078, %v1078
        %v1135 = vmul.f32 %v1083, %v1083
        %v1136 = vmul.f32 %v1088, %v1088
        %v1137 = vmul.f32 %v1093, %v1093
        %v1138 = vmul.f32 %v1098, %v1098
        %v1139 = vmul.f32 %v1103, %v1103
        %v1140 = vmul.f32 %v1123, 0.035677407
        %v1141 = vmul.f32 %v1124, 0.035677407
        %v1142 = vmul.f32 %v1125, 0.035677407
        %v1143 = vmul.f32 %v1126, 0.035677407
        %v1144 = vmul.f32 %v1127, 0.035677407
        %v1145 = vmul.f32 %v1128, 0.035677407
        %v1146 = vmul.f32 %v1129, 0.035677407
        %v1147 = vmul.f32 %v1130, 0.035677407
        %v1148 = vmul.f32 %v1131, 0.035677407
        %v1149 = vmul.f32 %v1132, 0.035677407
        %v1150 = vmul.f32 %v1133, 0.035677407
        %v1151 = vmul.f32 %v1134, 0.035677407
        %v1152 = vmul.f32 %v1135, 0.035677407
        %v1153 = vmul.f32 %v1136, 0.035677407
        %v1154 = vmul.f32 %v1137, 0.035677407
        %v1155 = vmul.f32 %v1138, 0.035677407
        %v1156 = vmul.f32 %v1139, 0.035677407
        %v1157 = vadd.f32 %v1140, 0.7978846
        %v1158 = vadd.f32 %v1141, 0.7978846
        %v1159 = vadd.f32 %v1142, 0.7978846
        %v1160 = vadd.f32 %v1143, 0.7978846
        %v1161 = vadd.f32 %v1144, 0.7978846
        %v1162 = vadd.f32 %v1145, 0.7978846
        %v1163 = vadd.f32 %v1146, 0.7978846
        %v1164 = vadd.f32 %v1147, 0.7978846
        %v1165 = vadd.f32 %v1148, 0.7978846
        %v1166 = vadd.f32 %v1149, 0.7978846
        %v1167 = vadd.f32 %v1150, 0.7978846
        %v1168 = vadd.f32 %v1151, 0.7978846
        %v1169 = vadd.f32 %v1152, 0.7978846
        %v1170 = vadd.f32 %v1153, 0.7978846
        %v1171 = vadd.f32 %v1154, 0.7978846
        %v1172 = vadd.f32 %v1155, 0.7978846
        %v1173 = vadd.f32 %v1156, 0.7978846
        %v1174 = vmul.f32 %v1023, %v1157
        %v1175 = vmul.f32 %v1028, %v1158
        %v1176 = vmul.f32 %v1033, %v1159
        %v1177 = vmul.f32 %v1038, %v1160
        %v1178 = vmul.f32 %v1043, %v1161
        %v1179 = vmul.f32 %v1048, %v1162
        %v1180 = vmul.f32 %v1053, %v1163
        %v1181 = vmul.f32 %v1058, %v1164
        %v1182 = vmul.f32 %v1063, %v1165
        %v1183 = vmul.f32 %v1068, %v1166
        %v1184 = vmul.f32 %v1073, %v1167
        %v1185 = vmul.f32 %v1078, %v1168
        %v1186 = vmul.f32 %v1083, %v1169
        %v1187 = vmul.f32 %v1088, %v1170
        %v1188 = vmul.f32 %v1093, %v1171
        %v1189 = vmul.f32 %v1098, %v1172
        %v1190 = vmul.f32 %v1103, %v1173
        %v1191 = vxor.u32 %v1174, 2147483648
        %v1192 = vxor.u32 %v1175, 2147483648
        %v1193 = vxor.u32 %v1176, 2147483648
        %v1194 = vxor.u32 %v1177, 2147483648
        %v1195 = vxor.u32 %v1178, 2147483648
        %v1196 = vxor.u32 %v1179, 2147483648
        %v1197 = vxor.u32 %v1180, 2147483648
        %v1198 = vxor.u32 %v1181, 2147483648
        %v1199 = vxor.u32 %v1182, 2147483648
        %v1200 = vxor.u32 %v1183, 2147483648
        %v1201 = vxor.u32 %v1184, 2147483648
        %v1202 = vxor.u32 %v1185, 2147483648
        %v1203 = vxor.u32 %v1186, 2147483648
        %v1204 = vxor.u32 %v1187, 2147483648
        %v1205 = vxor.u32 %v1188, 2147483648
        %v1206 = vxor.u32 %v1189, 2147483648
        %v1207 = vxor.u32 %v1190, 2147483648
        %v1208 = vmul.f32 %v1191, 1.442695
        %v1209 = vpow.pop %v1208
        %v1210 = vmul.f32 %v1192, 1.442695
        %v1211 = vpow.pop %v1210
        %v1212 = vmul.f32 %v1193, 1.442695
        %v1213 = vpow.pop %v1212
        %v1214 = vmul.f32 %v1194, 1.442695
        %v1215 = vpow.pop %v1214
        %v1216 = vmul.f32 %v1195, 1.442695
        %v1217 = vpow.pop %v1216
        %v1218 = vmul.f32 %v1196, 1.442695
        %v1219 = vpow.pop %v1218
        %v1220 = vmul.f32 %v1197, 1.442695
        %v1221 = vpow.pop %v1220
        %v1222 = vmul.f32 %v1198, 1.442695
        %v1223 = vpow.pop %v1222
        %v1224 = vmul.f32 %v1199, 1.442695
        %v1225 = vpow.pop %v1224
        %v1226 = vmul.f32 %v1200, 1.442695
        %v1227 = vpow.pop %v1226
        %v1228 = vmul.f32 %v1201, 1.442695
        %v1229 = vpow.pop %v1228
        %v1230 = vmul.f32 %v1202, 1.442695
        %v1231 = vpow.pop %v1230
        %v1232 = vmul.f32 %v1203, 1.442695
        %v1233 = vpow.pop %v1232
        %v1234 = vmul.f32 %v1204, 1.442695
        %v1235 = vpow.pop %v1234
        %v1236 = vmul.f32 %v1205, 1.442695
        %v1237 = vpow.pop %v1236
        %v1238 = vmul.f32 %v1206, 1.442695
        %v1239 = vpow.pop %v1238
        %v1240 = vmul.f32 %v1207, 1.442695
        %v1241 = vpow.pop %v1240
        %v1242 = vadd.f32 %v1209, 1.0
        %v1243 = vadd.f32 %v1211, 1.0
        %v1244 = vadd.f32 %v1213, 1.0
        %v1245 = vadd.f32 %v1215, 1.0
        %v1246 = vadd.f32 %v1217, 1.0
        %v1247 = vadd.f32 %v1219, 1.0
        %v1248 = vadd.f32 %v1221, 1.0
        %v1249 = vadd.f32 %v1223, 1.0
        %v1250 = vadd.f32 %v1225, 1.0
        %v1251 = vadd.f32 %v1227, 1.0
        %v1252 = vadd.f32 %v1229, 1.0
        %v1253 = vadd.f32 %v1231, 1.0
        %v1254 = vadd.f32 %v1233, 1.0
        %v1255 = vadd.f32 %v1235, 1.0
        %v1256 = vadd.f32 %v1237, 1.0
        %v1257 = vadd.f32 %v1239, 1.0
        %v1258 = vadd.f32 %v1241, 1.0
        %v1259 = vrcp.pop %v1242
        %v1260 = vmul.f32 1.0, %v1259
        %v1261 = vrcp.pop %v1243
        %v1262 = vmul.f32 1.0, %v1261
        %v1263 = vrcp.pop %v1244
        %v1264 = vmul.f32 1.0, %v1263
        %v1265 = vrcp.pop %v1245
        %v1266 = vmul.f32 1.0, %v1265
        %v1267 = vrcp.pop %v1246
        %v1268 = vmul.f32 1.0, %v1267
        %v1269 = vrcp.pop %v1247
        %v1270 = vmul.f32 1.0, %v1269
        %v1271 = vrcp.pop %v1248
        %v1272 = vmul.f32 1.0, %v1271
        %v1273 = vrcp.pop %v1249
        %v1274 = vmul.f32 1.0, %v1273
        %v1275 = vrcp.pop %v1250
        %v1276 = vmul.f32 1.0, %v1275
        %v1277 = vrcp.pop %v1251
        %v1278 = vmul.f32 1.0, %v1277
        %v1279 = vrcp.pop %v1252
        %v1280 = vmul.f32 1.0, %v1279
        %v1281 = vrcp.pop %v1253
        %v1282 = vmul.f32 1.0, %v1281
        %v1283 = vrcp.pop %v1254
        %v1284 = vmul.f32 1.0, %v1283
        %v1285 = vrcp.pop %v1255
        %v1286 = vmul.f32 1.0, %v1285
        %v1287 = vrcp.pop %v1256
        %v1288 = vmul.f32 1.0, %v1287
        %v1289 = vrcp.pop %v1257
        %v1290 = vmul.f32 1.0, %v1289
        %v1291 = vrcp.pop %v1258
        %v1292 = vmul.f32 1.0, %v1291
        %v1293 = vmul.f32 %v1106, %v1260
        %v1294 = vmul.f32 %v1107, %v1262
        %v1295 = vmul.f32 %v1108, %v1264
        %v1296 = vmul.f32 %v1109, %v1266
        %v1297 = vmul.f32 %v1110, %v1268
        %v1298 = vmul.f32 %v1111, %v1270
        %v1299 = vmul.f32 %v1112, %v1272
        %v1300 = vmul.f32 %v1113, %v1274
        %v1301 = vmul.f32 %v1114, %v1276
        %v1302 = vmul.f32 %v1115, %v1278
        %v1303 = vmul.f32 %v1116, %v1280
        %v1304 = vmul.f32 %v1117, %v1282
        %v1305 = vmul.f32 %v1118, %v1284
        %v1306 = vmul.f32 %v1119, %v1286
        %v1307 = vmul.f32 %v1120, %v1288
        %v1308 = vmul.f32 %v1121, %v1290
        %v1309 = vmul.f32 %v1122, %v1292
        %v1310 = vadd.f32 %v1106, %v1293
        %v1311 = vadd.f32 %v1107, %v1294
        %v1312 = vadd.f32 %v1108, %v1295
        %v1313 = vadd.f32 %v1109, %v1296
        %v1314 = vadd.f32 %v1110, %v1297
        %v1315 = vadd.f32 %v1111, %v1298
        %v1316 = vadd.f32 %v1112, %v1299
        %v1317 = vadd.f32 %v1113, %v1300
        %v1318 = vadd.f32 %v1114, %v1301
        %v1319 = vadd.f32 %v1115, %v1302
        %v1320 = vadd.f32 %v1116, %v1303
        %v1321 = vadd.f32 %v1117, %v1304
        %v1322 = vadd.f32 %v1118, %v1305
        %v1323 = vadd.f32 %v1119, %v1306
        %v1324 = vadd.f32 %v1120, %v1307
        %v1325 = vadd.f32 %v1121, %v1308
        %v1326 = vadd.f32 %v1122, %v1309
        %1327 = vst [vmem:[%s223] sm:$0xff] %v1310
        %1328 = vst [vmem:[%s223 + $0x8] sm:$0xff] %v1311
        %1329 = vst [vmem:[%s223 + $0x10] sm:$0xff] %v1312
        %1330 = vst [vmem:[%s223 + $0x18] sm:$0xff] %v1313
        %1331 = vst [vmem:[%s223 + $0x20] sm:$0xff] %v1314
        %1332 = vst [vmem:[%s223 + $0x28] sm:$0xff] %v1315
        %1333 = vst [vmem:[%s223 + $0x30] sm:$0xff] %v1316
        %1334 = vst [vmem:[%s223 + $0x38] sm:$0xff] %v1317
        %1335 = vst [vmem:[%s223 + $0x40] sm:$0xff] %v1318
        %1336 = vst [vmem:[%s223 + $0x48] sm:$0xff] %v1319
        %1337 = vst [vmem:[%s223 + $0x50] sm:$0xff] %v1320
        %1338 = vst [vmem:[%s223 + $0x58] sm:$0xff] %v1321
        %1339 = vst [vmem:[%s223 + $0x60] sm:$0xff] %v1322
        %1340 = vst [vmem:[%s223 + $0x68] sm:$0xff] %v1323
        %1341 = vst [vmem:[%s223 + $0x70] sm:$0xff] %v1324
        %1342 = vst [vmem:[%s223 + $0x78] sm:$0xff] %v1325
        %1343 = vst [vmem:[%s223 + $0x80] sm:$0xff] %v1326
        %s1344 = sand.u32 %s97, 1
        %s1345 = scalar_lea.sflag [#allocation4], %s1344
        %s1346 = sand.u32 %s97, 1
        %s1347 = smul.addr %s1346, 136
        %s1348 = scalar_lea.vmem [#allocation8], %s1347
        // Predicated region
        $region45: #{tpu_custom_call.1} parent=31 // pred_check
          %p1349 = pneg %p107
        $region46: #{tpu_custom_call.1} parent=31 // pred_check_branch
          %1351 = sbr.rel (%p1349) target = $region48
        $region47: #{tpu_custom_call.1} parent=31 // pred_region
          %s1352 = smul.u32 17, %s21
          %s1353 = ssub.s32 65, %s1352
          %p1354 = scmp.lt.s32.totalorder %s1353, 17
          %s1355 = scalar_select %p1354, %s1353, 17
          %s1356 = smul.u32 128, %s1355
          %s1358 = ssub.s32 2176, %s1356
          %1359 = vsyncadd %s1345, %s1358
          %p1360 = scmp.ne.s32.totalorder 0, %s1356
          %s1361 = smul.addr %s1352, 128
          %s1362 = scalar_lea.hbm %s3, %s1361
          %s1363 = smul.u32 8, %s1355
          %s1364 = sshll.u32 %s1348, 4
          %s1365 = int_to_ptr.vmem [resolvable:$true] %s1364
          %s1366 = sshll.u32 %s1363, 4
          %1370 = dma.vmem_to_hbm [thread:$0]  (%p1360), %s1365, %s1366, %s1362, %s1345, 128, 128, 8
        $region48: #{tpu_custom_call.1} parent=31 // pred_fallthru
          _
      $region32: #{tpu_custom_call.1} parent=5 // pred_fallthru
        _
      %p1371 = scmp.le.s32.totalorder 2, %s16
      // Predicated region
      $region49: #{tpu_custom_call.1} parent=5 // pred_check
        %p1372 = pneg %p1371
      $region50: #{tpu_custom_call.1} parent=5 // pred_check_branch
        %1374 = sbr.rel (%p1372) target = $region52
      $region51: #{tpu_custom_call.1} parent=5 // pred_region
        %s1375 = ssub.s32 %s16, 2
        // Predicated region
        $region53: #{tpu_custom_call.1} parent=51 // pred_check
          %p1376 = pneg %p113
        $region54: #{tpu_custom_call.1} parent=51 // pred_check_branch
          %1378 = sbr.rel (%p1376) target = $region56
        $region55: #{tpu_custom_call.1} parent=51 // pred_region
          %s1379 = sand.u32 %s98, 1
          %s1380 = scalar_lea.sflag [#allocation4], %s1379
          %s1381 = sand.u32 %s98, 1
          %s1382 = smul.addr %s1381, 136
          %s1383 = scalar_lea.vmem [#allocation8], %s1382
          %1384 = dma.done %s1380, 2176
        $region56: #{tpu_custom_call.1} parent=51 // pred_fallthru
          _
      $region52: #{tpu_custom_call.1} parent=5 // pred_fallthru
        _
    $region6: #{tpu_custom_call.1} parent=1 // loop_footer
      %s20 = sadd.s32 1, %s16
    $region7: #{tpu_custom_call.1} parent=1 // loop_footer_branch
      %15 = sbr.rel target = $region3
    $region8: #{tpu_custom_call.1} parent=1 // loop_exit
      _
    %1385 = vsyncpa [#allocation3], 1
    %s1386 = scalar_lea.sflag [#allocation3], 1
    %1387 = vsyncpa %s1386, 1
    %1388 = vsyncpa [#allocation6], 1
    %1389 = vsyncpa [#allocation4], 1
    %s1390 = scalar_lea.sflag [#allocation4], 1
    %1391 = vsyncpa %s1390, 1

</llo_original>
